<compile_context>
chip_gen: v7x
topology: tpu7x:2x2x1
jax: 0.10.0
libtpu: 0.0.40
codegen_flags: <defaults>
</compile_context>

<pallas_src>
import functools
import math

import jax
import jax.numpy as jnp
from jax.experimental import pallas as pl
from jax.experimental.pallas import tpu as pltpu


def _layernorm(v, w, b, eps=1e-5):
    mu = jnp.mean(v, axis=-1, keepdims=True)
    var = jnp.mean((v - mu) ** 2, axis=-1, keepdims=True)
    return (v - mu) * jax.lax.rsqrt(var + eps) * w + b


def _encoder_kernel(*refs, num_heads, has_mask, has_mask2, precise):
    it = iter(refs)
    x_ref = next(it)
    mask_ref = next(it) if has_mask else None
    mask2_ref = next(it) if has_mask2 else None
    ln1w_ref, ln1b_ref = next(it), next(it)
    wqkv_ref = next(it)
    wo_ref = next(it)
    ln2w_ref, ln2b_ref = next(it), next(it)
    w1_ref, b1_ref, w2_ref, b2_ref = next(it), next(it), next(it), next(it)
    o_ref = next(it)

    Bt, S, E = x_ref.shape
    H = num_heads
    hd = E // H
    scale = 1.0 / math.sqrt(hd)          # PyTorch Attention scales by sqrt(head_dim)
    mm = jnp.float32 if precise else jnp.bfloat16

    # ---- LayerNorm 1 over all Bt*S rows (f32); leading-dim merge is free ----
    x = x_ref[...].astype(jnp.float32).reshape(Bt * S, E)
    inp = _layernorm(x, ln1w_ref[...], ln1b_ref[...])

    # ---- fused QKV projection (bias=False) + relu; bf16 operands, f32 accum ----
    qkv = jnp.maximum(
        jnp.dot(inp.astype(mm), wqkv_ref[...], preferred_element_type=jnp.float32),
        0.0)                              # (Bt*S, 3E)
    q = (qkv[:, :E] * scale).reshape(Bt, S, E)
    k = qkv[:, E:2 * E].reshape(Bt, S, E)
    v = qkv[:, 2 * E:].reshape(Bt, S, E)

    # Mask upcasts hoisted out of the head loop; the add stays in f32 so the
    # -1e9 sentinel is never rounded through bf16 arithmetic.
    mask_f = mask_ref[...].astype(jnp.float32) if has_mask else None      # (Bt,S,S)
    mask2_f = mask2_ref[...].astype(jnp.float32) if has_mask2 else None   # (Bt,S,S)

    # ---- attention: short unrolled loop over heads, batched over the tile ----
    ctx_heads = []
    for h in range(H):
        cols = slice(h * hd, (h + 1) * hd)
        qh = q[:, :, cols].astype(mm)     # (Bt, S, hd)
        kh = k[:, :, cols].astype(mm)
        vh = v[:, :, cols].astype(mm)

        # (Bt, S, S) scores in f32, single-batch-dim MXU einsum
        s = jnp.einsum("bqd,bkd->bqk", qh, kh, preferred_element_type=jnp.float32)
        if has_mask:
            s = s + mask_f                # additive pre-softmax bias
        s = s - jnp.max(s, axis=-1, keepdims=True)
        p = jnp.exp(s)
        denom = jnp.sum(p, axis=-1, keepdims=True)
        if precise:
            p = p / denom
        else:
            p = p * pl.reciprocal(denom, approx=True)   # EUP slot, frees VALU
        if has_mask2:
            p = jnp.maximum(p + mask2_f, 0.0)           # post-softmax add + relu

        ctx_heads.append(
            jnp.einsum("bqk,bkd->bqd", p.astype(mm), vh,
                       preferred_element_type=jnp.float32))   # (Bt, S, hd)

    # one-time lane re-merge of heads, then a single full-depth Wo matmul
    ctx = jnp.concatenate(ctx_heads, axis=-1).reshape(Bt * S, E)
    y = jnp.maximum(
        jnp.dot(ctx.astype(mm), wo_ref[...], preferred_element_type=jnp.float32),
        0.0)                              # relu(linear_o(.)), bias=False

    # ---- residual 1 + LayerNorm 2 (f32) ----
    x1 = x + y
    x2 = _layernorm(x1, ln2w_ref[...], ln2b_ref[...])

    # ---- feed-forward: Linear(E,F)+relu, Linear(F,E), biases present ----
    h1 = jnp.maximum(
        jnp.dot(x2.astype(mm), w1_ref[...], preferred_element_type=jnp.float32)
        + b1_ref[...], 0.0)
    h2 = jnp.dot(h1.astype(mm), w2_ref[...], preferred_element_type=jnp.float32) \
        + b2_ref[...]

    # ---- residual 2 (note: x2 + h2, i.e. post-LN2 residual, matches NAIM) ----
    o_ref[...] = (x2 + h2).reshape(Bt, S, E).astype(o_ref.dtype)


def _vmem_capacity_bytes(default=64 * 1024 * 1024):
    try:
        return int(getattr(pltpu.get_tpu_info(), "vmem_capacity_bytes", default))
    except Exception:  # pragma: no cover - CPU / older runtimes
        return default


def encoder_block_pallas(x, params, mask=None, mask2=None, *, num_heads,
                         batch_tile=None, precise=False,
                         single_buffer_weights=False):
    B, S, E = x.shape
    F_dim = params["w1"].shape[1]
    H = num_heads
    assert E % H == 0

    has_mask = mask is not None
    has_mask2 = mask2 is not None
    mm = jnp.float32 if precise else jnp.bfloat16
    mask_dtype = jnp.float32 if precise else jnp.bfloat16

    # ---- generation-aware sizing ----
    vmem_cap = _vmem_capacity_bytes()
    big_vmem = vmem_cap >= 100 * 1024 * 1024   # v5e/v6e (128 MiB, single TC)

    if batch_tile is None:
        divisors = [d for d in range(1, B + 1) if B % d == 0]
        # rough per-batch-element f32 working set: x/ln/qkv/ff activations + scores
        per_elem = 4 * (8 * S * E + 2 * S * F_dim + 3 * S * S)
        fits = [d for d in divisors if d * per_elem <= vmem_cap // 4] or [1]
        if big_vmem:
            batch_tile = max(fits)               # single TC: fewest grid steps
        else:
            two_plus = [d for d in fits if B // d >= 2]   # feed both v7x TCs
            batch_tile = max(two_plus) if two_plus else max(fits)
    assert B % batch_tile == 0
    grid = (B // batch_tile,)

    vmem_limit = 96 * 1024 * 1024 if big_vmem else 48 * 1024 * 1024

    kernel = functools.partial(_encoder_kernel, num_heads=H, has_mask=has_mask,
                               has_mask2=has_mask2, precise=precise)

    def batched(trailing):                       # per-batch-tile block
        return pl.BlockSpec((batch_tile,) + trailing,
                            lambda b: (b,) + (0,) * len(trailing))

    def full(shape):                             # resident weights, DMAed once
        if single_buffer_weights:
            return pl.BlockSpec(shape, lambda b: (0,) * len(shape),
                                pipeline_mode=pl.Buffered(1))
        return pl.BlockSpec(shape, lambda b: (0,) * len(shape))

    in_specs = [batched((S, E))]
    inputs = [x]
    if has_mask:
        in_specs.append(batched((S, S)))
        inputs.append(mask.astype(mask_dtype))
    if has_mask2:
        in_specs.append(batched((S, S)))
        inputs.append(mask2.astype(mask_dtype))

    wqkv = jnp.concatenate(
        [params["wq"], params["wk"], params["wv"]], axis=1).astype(mm)  # (E, 3E)

    in_specs += [
        full((1, E)), full((1, E)),                 # LN1 weight, bias (f32)
        full((E, 3 * E)),                           # fused Wqkv (mm dtype)
        full((E, E)),                               # Wo (mm dtype)
        full((1, E)), full((1, E)),                 # LN2 weight, bias (f32)
        full((E, F_dim)), full((1, F_dim)),         # FF1 W (mm), bias (f32)
        full((F_dim, E)), full((1, E)),             # FF2 W (mm), bias (f32)
    ]
    inputs += [
        params["ln1_w"], params["ln1_b"],
        wqkv,
        params["wo"].astype(mm),
        params["ln2_w"], params["ln2_b"],
        params["w1"].astype(mm), params["b1"],
        params["w2"].astype(mm), params["b2"],
    ]

    grid_spec = pltpu.PrefetchScalarGridSpec(
        num_scalar_prefetch=0,
        grid=grid,
        in_specs=in_specs,
        out_specs=pl.BlockSpec((batch_tile, S, E), lambda b: (b, 0, 0)),
    )

    return pl.pallas_call(
        kernel,
        grid_spec=grid_spec,
        out_shape=jax.ShapeDtypeStruct((B, S, E), jnp.float32),
        compiler_params=pltpu.CompilerParams(
            dimension_semantics=("parallel",),
            vmem_limit_bytes=vmem_limit,
        ),
    )(*inputs)


def encoder_block_ref(x, params, mask=None, mask2=None, *, num_heads):
    """Pure-JAX f32 reference mirroring the PyTorch EncoderBlock forward."""
    B, S, E = x.shape
    hd = E // num_heads

    def ln(v, w, b):
        mu = jnp.mean(v, -1, keepdims=True)
        var = jnp.mean((v - mu) ** 2, -1, keepdims=True)
        return (v - mu) / jnp.sqrt(var + 1e-5) * w + b

    inp = ln(x, params["ln1_w"], params["ln1_b"])
    q = jax.nn.relu(inp @ params["wq"])
    k = jax.nn.relu(inp @ params["wk"])
    v = jax.nn.relu(inp @ params["wv"])

    def split(t):  # (B,S,E) -> (B,H,S,hd)
        return t.reshape(B, S, num_heads, hd).transpose(0, 2, 1, 3)

    qh, kh, vh = split(q), split(k), split(v)
    logits = jnp.einsum("bhsd,bhtd->bhst", qh / math.sqrt(hd), kh)
    if mask is not None:
        logits = logits + mask[:, None]
    attn = jax.nn.softmax(logits, axis=-1)
    if mask2 is not None:
        attn = jax.nn.relu(attn + mask2[:, None])
    y = jnp.einsum("bhst,bhtd->bhsd", attn, vh)
    y = y.transpose(0, 2, 1, 3).reshape(B, S, E)
    y = jax.nn.relu(y @ params["wo"])
    x1 = x + y
    x2 = ln(x1, params["ln2_w"], params["ln2_b"])
    h1 = jax.nn.relu(x2 @ params["w1"] + params["b1"])
    h2 = h1 @ params["w2"] + params["b2"]
    return x2 + h2


def init_params(key, emb_dim, ff_dim):
    ks = jax.random.split(key, 12)
    n = lambda k, shp, s=0.1: s * jax.random.normal(k, shp, jnp.float32)
    return dict(
        ln1_w=1.0 + n(ks[0], (1, emb_dim)),
        ln1_b=n(ks[1], (1, emb_dim)),
        wq=n(ks[2], (emb_dim, emb_dim)),
        wk=n(ks[3], (emb_dim, emb_dim)),
        wv=n(ks[4], (emb_dim, emb_dim)),
        wo=n(ks[5], (emb_dim, emb_dim)),
        ln2_w=1.0 + n(ks[6], (1, emb_dim)),
        ln2_b=n(ks[7], (1, emb_dim)),
        w1=n(ks[8], (emb_dim, ff_dim)),
        b1=n(ks[9], (1, ff_dim)),
        w2=n(ks[10], (ff_dim, emb_dim)),
        b2=n(ks[11], (1, emb_dim)),
    )


if __name__ == "__main__":
    B, S, E, H, FF = 4, 8, 32, 4, 64
    key = jax.random.PRNGKey(0)
    kx, kp, km1, km2 = jax.random.split(key, 4)
    x = jax.random.normal(kx, (B, S, E), jnp.float32)
    params = init_params(kp, E, FF)

    # NAIM-style masks: additive pre-softmax bias (0 / -1e9, diagonal kept open)
    # and a post-softmax additive mask (0 / -1) followed by relu.
    m1 = jnp.where(jax.random.uniform(km1, (B, S, S)) < 0.25, -1e9, 0.0)
    m1 = jnp.where(jnp.eye(S, dtype=bool)[None], 0.0, m1)
    m2 = jnp.where(jax.random.uniform(km2, (B, S, S)) < 0.25, -1.0, 0.0)

    ref = encoder_block_ref(x, params, num_heads=H)

    # 1) precise path (f32 matmuls, exact softmax division): tight check.
    out_f32 = jax.block_until_ready(
        encoder_block_pallas(x, params, num_heads=H, precise=True))
    assert out_f32.shape == (B, S, E)
    assert jnp.allclose(out_f32, ref, atol=1e-3, rtol=1e-3), \
        f"f32 mismatch: {jnp.max(jnp.abs(out_f32 - ref))}"

    # 2) perf path (bf16 matmul operands + approx reciprocal), no masks.
    #    bf16 rounding through 5 matmuls + the approximate softmax denominator
    #    (rows no longer sum exactly to 1) motivates the 1e-1 tolerance.
    out_bf = jax.block_until_ready(encoder_block_pallas(x, params, num_heads=H))
    assert jnp.allclose(out_bf, ref, atol=1e-1, rtol=1e-1), \
        f"bf16 mismatch: {jnp.max(jnp.abs(out_bf - ref))}"

    # 3) perf path with both masks (exercises the mask-specialized kernel,
    #    bf16 mask transport with f32 in-kernel addition).
    out_m = jax.block_until_ready(
        encoder_block_pallas(x, params, mask=m1, mask2=m2, num_heads=H))
    ref_m = encoder_block_ref(x, params, mask=m1, mask2=m2, num_heads=H)
    assert jnp.allclose(out_m, ref_m, atol=1e-1, rtol=1e-1), \
        f"masked bf16 mismatch: {jnp.max(jnp.abs(out_m - ref_m))}"

    print("KERNEL_OK")
</pallas_src>

<mosaic_0001>
module attributes {stable_mosaic.version = 11 : i64} {
  func.func @_encoder_kernel(%arg0: i32, %arg1: memref<2x8x32xf32, #tpu.memory_space<vmem>>, %arg2: memref<1x32xf32, #tpu.memory_space<vmem>>, %arg3: memref<1x32xf32, #tpu.memory_space<vmem>>, %arg4: memref<32x96xf32, #tpu.memory_space<vmem>>, %arg5: memref<32x32xf32, #tpu.memory_space<vmem>>, %arg6: memref<1x32xf32, #tpu.memory_space<vmem>>, %arg7: memref<1x32xf32, #tpu.memory_space<vmem>>, %arg8: memref<32x64xf32, #tpu.memory_space<vmem>>, %arg9: memref<1x64xf32, #tpu.memory_space<vmem>>, %arg10: memref<64x32xf32, #tpu.memory_space<vmem>>, %arg11: memref<1x32xf32, #tpu.memory_space<vmem>>, %arg12: memref<2x8x32xf32, #tpu.memory_space<vmem>>) attributes {dimension_semantics = [#tpu.dimension_semantics<parallel>], iteration_bounds = array<i64: 2>, scalar_prefetch = 0 : i64, scratch_operands = 0 : i64, tpu.core_type = #tpu.core_type<tc>, window_params = [{transform_indices = @transform_0, window_bounds = array<i64: 2, 8, 32>}, {pipeline_mode = #tpu.pipeline_mode<synchronous>, transform_indices = @transform_1, window_bounds = array<i64: 1, 32>}, {pipeline_mode = #tpu.pipeline_mode<synchronous>, transform_indices = @transform_2, window_bounds = array<i64: 1, 32>}, {pipeline_mode = #tpu.pipeline_mode<synchronous>, transform_indices = @transform_3, window_bounds = array<i64: 32, 96>}, {pipeline_mode = #tpu.pipeline_mode<synchronous>, transform_indices = @transform_4, window_bounds = array<i64: 32, 32>}, {pipeline_mode = #tpu.pipeline_mode<synchronous>, transform_indices = @transform_5, window_bounds = array<i64: 1, 32>}, {pipeline_mode = #tpu.pipeline_mode<synchronous>, transform_indices = @transform_6, window_bounds = array<i64: 1, 32>}, {pipeline_mode = #tpu.pipeline_mode<synchronous>, transform_indices = @transform_7, window_bounds = array<i64: 32, 64>}, {pipeline_mode = #tpu.pipeline_mode<synchronous>, transform_indices = @transform_8, window_bounds = array<i64: 1, 64>}, {pipeline_mode = #tpu.pipeline_mode<synchronous>, transform_indices = @transform_9, window_bounds = array<i64: 64, 32>}, {pipeline_mode = #tpu.pipeline_mode<synchronous>, transform_indices = @transform_10, window_bounds = array<i64: 1, 32>}, {transform_indices = @transform_11, window_bounds = array<i64: 2, 8, 32>}]} {
    %c0 = arith.constant 0 : index
    %c0_0 = arith.constant 0 : index
    %c0_1 = arith.constant 0 : index
    %0 = vector.load %arg1[%c0, %c0_0, %c0_1] : memref<2x8x32xf32, #tpu.memory_space<vmem>>, vector<2x8x32xf32>
    %1 = vector.shape_cast %0 : vector<2x8x32xf32> to vector<16x32xf32>
    %c0_2 = arith.constant 0 : index
    %c0_3 = arith.constant 0 : index
    %2 = vector.load %arg2[%c0_2, %c0_3] : memref<1x32xf32, #tpu.memory_space<vmem>>, vector<1x32xf32>
    %c0_4 = arith.constant 0 : index
    %c0_5 = arith.constant 0 : index
    %3 = vector.load %arg3[%c0_4, %c0_5] : memref<1x32xf32, #tpu.memory_space<vmem>>, vector<1x32xf32>
    %cst = arith.constant dense<0.000000e+00> : vector<16xf32>
    %4 = vector.multi_reduction <add>, %1, %cst [1] : vector<16x32xf32> to vector<16xf32>
    %5 = vector.shape_cast %4 : vector<16xf32> to vector<16x1xf32>
    %cst_6 = arith.constant 3.200000e+01 : f32
    %6 = vector.broadcast %cst_6 : f32 to vector<16x1xf32>
    %7 = arith.divf %5, %6 : vector<16x1xf32>
    %8 = vector.broadcast %7 : vector<16x1xf32> to vector<16x32xf32>
    %9 = arith.subf %1, %8 : vector<16x32xf32>
    %10 = arith.mulf %9, %9 : vector<16x32xf32>
    %cst_7 = arith.constant dense<0.000000e+00> : vector<16xf32>
    %11 = vector.multi_reduction <add>, %10, %cst_7 [1] : vector<16x32xf32> to vector<16xf32>
    %12 = vector.shape_cast %11 : vector<16xf32> to vector<16x1xf32>
    %cst_8 = arith.constant 3.200000e+01 : f32
    %13 = vector.broadcast %cst_8 : f32 to vector<16x1xf32>
    %14 = arith.divf %12, %13 : vector<16x1xf32>
    %15 = vector.broadcast %7 : vector<16x1xf32> to vector<16x32xf32>
    %16 = arith.subf %1, %15 : vector<16x32xf32>
    %cst_9 = arith.constant 9.99999974E-6 : f32
    %17 = vector.broadcast %cst_9 : f32 to vector<16x1xf32>
    %18 = arith.addf %14, %17 : vector<16x1xf32>
    %19 = math.rsqrt %18 : vector<16x1xf32>
    %20 = vector.broadcast %19 : vector<16x1xf32> to vector<16x32xf32>
    %21 = arith.mulf %16, %20 : vector<16x32xf32>
    %22 = vector.broadcast %2 : vector<1x32xf32> to vector<16x32xf32>
    %23 = arith.mulf %21, %22 : vector<16x32xf32>
    %24 = vector.broadcast %3 : vector<1x32xf32> to vector<16x32xf32>
    %25 = arith.addf %23, %24 : vector<16x32xf32>
    %c0_10 = arith.constant 0 : index
    %c0_11 = arith.constant 0 : index
    %26 = vector.load %arg4[%c0_10, %c0_11] : memref<32x96xf32, #tpu.memory_space<vmem>>, vector<32x96xf32>
    %cst_12 = arith.constant dense<0.000000e+00> : vector<16x96xf32>
    %27 = tpu.matmul %25, %26, %cst_12 {dimension_numbers = #tpu.dot_dimension_numbers<[1], [0], [0], [1], [0, 0, 1, 1], [], []>} : vector<16x32xf32>, vector<32x96xf32>, vector<16x96xf32> -> vector<16x96xf32>
    %cst_13 = arith.constant 0.000000e+00 : f32
    %28 = vector.broadcast %cst_13 : f32 to vector<16x96xf32>
    %29 = arith.maximumf %27, %28 : vector<16x96xf32>
    %30 = vector.extract_strided_slice %29 {offsets = [0, 0], sizes = [16, 32], strides = [1, 1]} : vector<16x96xf32> to vector<16x32xf32>
    %cst_14 = arith.constant 0.353553385 : f32
    %31 = vector.broadcast %cst_14 : f32 to vector<16x32xf32>
    %32 = arith.mulf %30, %31 : vector<16x32xf32>
    %33 = vector.shape_cast %32 : vector<16x32xf32> to vector<2x8x32xf32>
    %34 = vector.extract_strided_slice %29 {offsets = [0, 32], sizes = [16, 32], strides = [1, 1]} : vector<16x96xf32> to vector<16x32xf32>
    %35 = vector.shape_cast %34 : vector<16x32xf32> to vector<2x8x32xf32>
    %36 = vector.extract_strided_slice %29 {offsets = [0, 64], sizes = [16, 32], strides = [1, 1]} : vector<16x96xf32> to vector<16x32xf32>
    %37 = vector.shape_cast %36 : vector<16x32xf32> to vector<2x8x32xf32>
    %38 = vector.extract_strided_slice %33 {offsets = [0, 0, 0], sizes = [2, 8, 8], strides = [1, 1, 1]} : vector<2x8x32xf32> to vector<2x8x8xf32>
    %39 = vector.extract_strided_slice %35 {offsets = [0, 0, 0], sizes = [2, 8, 8], strides = [1, 1, 1]} : vector<2x8x32xf32> to vector<2x8x8xf32>
    %40 = vector.extract_strided_slice %37 {offsets = [0, 0, 0], sizes = [2, 8, 8], strides = [1, 1, 1]} : vector<2x8x32xf32> to vector<2x8x8xf32>
    "tpu.trace_start"() <{level = 10 : i32, message = "bqd,bkd->bqk"}> : () -> ()
    %cst_15 = arith.constant dense<0.000000e+00> : vector<2x8x8xf32>
    %41 = tpu.matmul %38, %39, %cst_15 {dimension_numbers = #tpu.dot_dimension_numbers<[2], [2], [1], [1], [0, 0, 0, 1, 1, 1], [0], [0]>} : vector<2x8x8xf32>, vector<2x8x8xf32>, vector<2x8x8xf32> -> vector<2x8x8xf32>
    "tpu.trace_stop"() : () -> ()
    %cst_16 = arith.constant dense<0xFF800000> : vector<2x8xf32>
    %42 = vector.multi_reduction <maximumf>, %41, %cst_16 [2] : vector<2x8x8xf32> to vector<2x8xf32>
    %43 = vector.shape_cast %42 : vector<2x8xf32> to vector<2x8x1xf32>
    %44 = vector.broadcast %43 : vector<2x8x1xf32> to vector<2x8x8xf32>
    %45 = arith.subf %41, %44 : vector<2x8x8xf32>
    %46 = math.exp %45 : vector<2x8x8xf32>
    %cst_17 = arith.constant dense<0.000000e+00> : vector<2x8xf32>
    %47 = vector.multi_reduction <add>, %46, %cst_17 [2] : vector<2x8x8xf32> to vector<2x8xf32>
    %48 = vector.shape_cast %47 : vector<2x8xf32> to vector<2x8x1xf32>
    %49 = vector.broadcast %48 : vector<2x8x1xf32> to vector<2x8x8xf32>
    %50 = arith.divf %46, %49 : vector<2x8x8xf32>
    "tpu.trace_start"() <{level = 10 : i32, message = "bqk,bkd->bqd"}> : () -> ()
    %cst_18 = arith.constant dense<0.000000e+00> : vector<2x8x8xf32>
    %51 = tpu.matmul %50, %40, %cst_18 {dimension_numbers = #tpu.dot_dimension_numbers<[2], [1], [1], [2], [0, 0, 0, 1, 1, 2], [0], [0]>} : vector<2x8x8xf32>, vector<2x8x8xf32>, vector<2x8x8xf32> -> vector<2x8x8xf32>
    "tpu.trace_stop"() : () -> ()
    %52 = vector.extract_strided_slice %33 {offsets = [0, 0, 8], sizes = [2, 8, 8], strides = [1, 1, 1]} : vector<2x8x32xf32> to vector<2x8x8xf32>
    %53 = vector.extract_strided_slice %35 {offsets = [0, 0, 8], sizes = [2, 8, 8], strides = [1, 1, 1]} : vector<2x8x32xf32> to vector<2x8x8xf32>
    %54 = vector.extract_strided_slice %37 {offsets = [0, 0, 8], sizes = [2, 8, 8], strides = [1, 1, 1]} : vector<2x8x32xf32> to vector<2x8x8xf32>
    "tpu.trace_start"() <{level = 10 : i32, message = "bqd,bkd->bqk"}> : () -> ()
    %cst_19 = arith.constant dense<0.000000e+00> : vector<2x8x8xf32>
    %55 = tpu.matmul %52, %53, %cst_19 {dimension_numbers = #tpu.dot_dimension_numbers<[2], [2], [1], [1], [0, 0, 0, 1, 1, 1], [0], [0]>} : vector<2x8x8xf32>, vector<2x8x8xf32>, vector<2x8x8xf32> -> vector<2x8x8xf32>
    "tpu.trace_stop"() : () -> ()
    %cst_20 = arith.constant dense<0xFF800000> : vector<2x8xf32>
    %56 = vector.multi_reduction <maximumf>, %55, %cst_20 [2] : vector<2x8x8xf32> to vector<2x8xf32>
    %57 = vector.shape_cast %56 : vector<2x8xf32> to vector<2x8x1xf32>
    %58 = vector.broadcast %57 : vector<2x8x1xf32> to vector<2x8x8xf32>
    %59 = arith.subf %55, %58 : vector<2x8x8xf32>
    %60 = math.exp %59 : vector<2x8x8xf32>
    %cst_21 = arith.constant dense<0.000000e+00> : vector<2x8xf32>
    %61 = vector.multi_reduction <add>, %60, %cst_21 [2] : vector<2x8x8xf32> to vector<2x8xf32>
    %62 = vector.shape_cast %61 : vector<2x8xf32> to vector<2x8x1xf32>
    %63 = vector.broadcast %62 : vector<2x8x1xf32> to vector<2x8x8xf32>
    %64 = arith.divf %60, %63 : vector<2x8x8xf32>
    "tpu.trace_start"() <{level = 10 : i32, message = "bqk,bkd->bqd"}> : () -> ()
    %cst_22 = arith.constant dense<0.000000e+00> : vector<2x8x8xf32>
    %65 = tpu.matmul %64, %54, %cst_22 {dimension_numbers = #tpu.dot_dimension_numbers<[2], [1], [1], [2], [0, 0, 0, 1, 1, 2], [0], [0]>} : vector<2x8x8xf32>, vector<2x8x8xf32>, vector<2x8x8xf32> -> vector<2x8x8xf32>
    "tpu.trace_stop"() : () -> ()
    %66 = vector.extract_strided_slice %33 {offsets = [0, 0, 16], sizes = [2, 8, 8], strides = [1, 1, 1]} : vector<2x8x32xf32> to vector<2x8x8xf32>
    %67 = vector.extract_strided_slice %35 {offsets = [0, 0, 16], sizes = [2, 8, 8], strides = [1, 1, 1]} : vector<2x8x32xf32> to vector<2x8x8xf32>
    %68 = vector.extract_strided_slice %37 {offsets = [0, 0, 16], sizes = [2, 8, 8], strides = [1, 1, 1]} : vector<2x8x32xf32> to vector<2x8x8xf32>
    "tpu.trace_start"() <{level = 10 : i32, message = "bqd,bkd->bqk"}> : () -> ()
    %cst_23 = arith.constant dense<0.000000e+00> : vector<2x8x8xf32>
    %69 = tpu.matmul %66, %67, %cst_23 {dimension_numbers = #tpu.dot_dimension_numbers<[2], [2], [1], [1], [0, 0, 0, 1, 1, 1], [0], [0]>} : vector<2x8x8xf32>, vector<2x8x8xf32>, vector<2x8x8xf32> -> vector<2x8x8xf32>
    "tpu.trace_stop"() : () -> ()
    %cst_24 = arith.constant dense<0xFF800000> : vector<2x8xf32>
    %70 = vector.multi_reduction <maximumf>, %69, %cst_24 [2] : vector<2x8x8xf32> to vector<2x8xf32>
    %71 = vector.shape_cast %70 : vector<2x8xf32> to vector<2x8x1xf32>
    %72 = vector.broadcast %71 : vector<2x8x1xf32> to vector<2x8x8xf32>
    %73 = arith.subf %69, %72 : vector<2x8x8xf32>
    %74 = math.exp %73 : vector<2x8x8xf32>
    %cst_25 = arith.constant dense<0.000000e+00> : vector<2x8xf32>
    %75 = vector.multi_reduction <add>, %74, %cst_25 [2] : vector<2x8x8xf32> to vector<2x8xf32>
    %76 = vector.shape_cast %75 : vector<2x8xf32> to vector<2x8x1xf32>
    %77 = vector.broadcast %76 : vector<2x8x1xf32> to vector<2x8x8xf32>
    %78 = arith.divf %74, %77 : vector<2x8x8xf32>
    "tpu.trace_start"() <{level = 10 : i32, message = "bqk,bkd->bqd"}> : () -> ()
    %cst_26 = arith.constant dense<0.000000e+00> : vector<2x8x8xf32>
    %79 = tpu.matmul %78, %68, %cst_26 {dimension_numbers = #tpu.dot_dimension_numbers<[2], [1], [1], [2], [0, 0, 0, 1, 1, 2], [0], [0]>} : vector<2x8x8xf32>, vector<2x8x8xf32>, vector<2x8x8xf32> -> vector<2x8x8xf32>
    "tpu.trace_stop"() : () -> ()
    %80 = vector.extract_strided_slice %33 {offsets = [0, 0, 24], sizes = [2, 8, 8], strides = [1, 1, 1]} : vector<2x8x32xf32> to vector<2x8x8xf32>
    %81 = vector.extract_strided_slice %35 {offsets = [0, 0, 24], sizes = [2, 8, 8], strides = [1, 1, 1]} : vector<2x8x32xf32> to vector<2x8x8xf32>
    %82 = vector.extract_strided_slice %37 {offsets = [0, 0, 24], sizes = [2, 8, 8], strides = [1, 1, 1]} : vector<2x8x32xf32> to vector<2x8x8xf32>
    "tpu.trace_start"() <{level = 10 : i32, message = "bqd,bkd->bqk"}> : () -> ()
    %cst_27 = arith.constant dense<0.000000e+00> : vector<2x8x8xf32>
    %83 = tpu.matmul %80, %81, %cst_27 {dimension_numbers = #tpu.dot_dimension_numbers<[2], [2], [1], [1], [0, 0, 0, 1, 1, 1], [0], [0]>} : vector<2x8x8xf32>, vector<2x8x8xf32>, vector<2x8x8xf32> -> vector<2x8x8xf32>
    "tpu.trace_stop"() : () -> ()
    %cst_28 = arith.constant dense<0xFF800000> : vector<2x8xf32>
    %84 = vector.multi_reduction <maximumf>, %83, %cst_28 [2] : vector<2x8x8xf32> to vector<2x8xf32>
    %85 = vector.shape_cast %84 : vector<2x8xf32> to vector<2x8x1xf32>
    %86 = vector.broadcast %85 : vector<2x8x1xf32> to vector<2x8x8xf32>
    %87 = arith.subf %83, %86 : vector<2x8x8xf32>
    %88 = math.exp %87 : vector<2x8x8xf32>
    %cst_29 = arith.constant dense<0.000000e+00> : vector<2x8xf32>
    %89 = vector.multi_reduction <add>, %88, %cst_29 [2] : vector<2x8x8xf32> to vector<2x8xf32>
    %90 = vector.shape_cast %89 : vector<2x8xf32> to vector<2x8x1xf32>
    %91 = vector.broadcast %90 : vector<2x8x1xf32> to vector<2x8x8xf32>
    %92 = arith.divf %88, %91 : vector<2x8x8xf32>
    "tpu.trace_start"() <{level = 10 : i32, message = "bqk,bkd->bqd"}> : () -> ()
    %cst_30 = arith.constant dense<0.000000e+00> : vector<2x8x8xf32>
    %93 = tpu.matmul %92, %82, %cst_30 {dimension_numbers = #tpu.dot_dimension_numbers<[2], [1], [1], [2], [0, 0, 0, 1, 1, 2], [0], [0]>} : vector<2x8x8xf32>, vector<2x8x8xf32>, vector<2x8x8xf32> -> vector<2x8x8xf32>
    "tpu.trace_stop"() : () -> ()
    %94 = tpu.concatenate %51, %65, %79, %93 in 2 : vector<2x8x8xf32>, vector<2x8x8xf32>, vector<2x8x8xf32>, vector<2x8x8xf32> -> vector<2x8x32xf32>
    %95 = vector.shape_cast %94 : vector<2x8x32xf32> to vector<16x32xf32>
    %c0_31 = arith.constant 0 : index
    %c0_32 = arith.constant 0 : index
    %96 = vector.load %arg5[%c0_31, %c0_32] : memref<32x32xf32, #tpu.memory_space<vmem>>, vector<32x32xf32>
    %cst_33 = arith.constant dense<0.000000e+00> : vector<16x32xf32>
    %97 = tpu.matmul %95, %96, %cst_33 {dimension_numbers = #tpu.dot_dimension_numbers<[1], [0], [0], [1], [0, 0, 1, 1], [], []>} : vector<16x32xf32>, vector<32x32xf32>, vector<16x32xf32> -> vector<16x32xf32>
    %cst_34 = arith.constant 0.000000e+00 : f32
    %98 = vector.broadcast %cst_34 : f32 to vector<16x32xf32>
    %99 = arith.maximumf %97, %98 : vector<16x32xf32>
    %100 = arith.addf %1, %99 : vector<16x32xf32>
    %c0_35 = arith.constant 0 : index
    %c0_36 = arith.constant 0 : index
    %101 = vector.load %arg6[%c0_35, %c0_36] : memref<1x32xf32, #tpu.memory_space<vmem>>, vector<1x32xf32>
    %c0_37 = arith.constant 0 : index
    %c0_38 = arith.constant 0 : index
    %102 = vector.load %arg7[%c0_37, %c0_38] : memref<1x32xf32, #tpu.memory_space<vmem>>, vector<1x32xf32>
    %cst_39 = arith.constant dense<0.000000e+00> : vector<16xf32>
    %103 = vector.multi_reduction <add>, %100, %cst_39 [1] : vector<16x32xf32> to vector<16xf32>
    %104 = vector.shape_cast %103 : vector<16xf32> to vector<16x1xf32>
    %cst_40 = arith.constant 3.200000e+01 : f32
    %105 = vector.broadcast %cst_40 : f32 to vector<16x1xf32>
    %106 = arith.divf %104, %105 : vector<16x1xf32>
    %107 = vector.broadcast %106 : vector<16x1xf32> to vector<16x32xf32>
    %108 = arith.subf %100, %107 : vector<16x32xf32>
    %109 = arith.mulf %108, %108 : vector<16x32xf32>
    %cst_41 = arith.constant dense<0.000000e+00> : vector<16xf32>
    %110 = vector.multi_reduction <add>, %109, %cst_41 [1] : vector<16x32xf32> to vector<16xf32>
    %111 = vector.shape_cast %110 : vector<16xf32> to vector<16x1xf32>
    %cst_42 = arith.constant 3.200000e+01 : f32
    %112 = vector.broadcast %cst_42 : f32 to vector<16x1xf32>
    %113 = arith.divf %111, %112 : vector<16x1xf32>
    %114 = vector.broadcast %106 : vector<16x1xf32> to vector<16x32xf32>
    %115 = arith.subf %100, %114 : vector<16x32xf32>
    %cst_43 = arith.constant 9.99999974E-6 : f32
    %116 = vector.broadcast %cst_43 : f32 to vector<16x1xf32>
    %117 = arith.addf %113, %116 : vector<16x1xf32>
    %118 = math.rsqrt %117 : vector<16x1xf32>
    %119 = vector.broadcast %118 : vector<16x1xf32> to vector<16x32xf32>
    %120 = arith.mulf %115, %119 : vector<16x32xf32>
    %121 = vector.broadcast %101 : vector<1x32xf32> to vector<16x32xf32>
    %122 = arith.mulf %120, %121 : vector<16x32xf32>
    %123 = vector.broadcast %102 : vector<1x32xf32> to vector<16x32xf32>
    %124 = arith.addf %122, %123 : vector<16x32xf32>
    %c0_44 = arith.constant 0 : index
    %c0_45 = arith.constant 0 : index
    %125 = vector.load %arg8[%c0_44, %c0_45] : memref<32x64xf32, #tpu.memory_space<vmem>>, vector<32x64xf32>
    %cst_46 = arith.constant dense<0.000000e+00> : vector<16x64xf32>
    %126 = tpu.matmul %124, %125, %cst_46 {dimension_numbers = #tpu.dot_dimension_numbers<[1], [0], [0], [1], [0, 0, 1, 1], [], []>} : vector<16x32xf32>, vector<32x64xf32>, vector<16x64xf32> -> vector<16x64xf32>
    %c0_47 = arith.constant 0 : index
    %c0_48 = arith.constant 0 : index
    %127 = vector.load %arg9[%c0_47, %c0_48] : memref<1x64xf32, #tpu.memory_space<vmem>>, vector<1x64xf32>
    %128 = vector.broadcast %127 : vector<1x64xf32> to vector<16x64xf32>
    %129 = arith.addf %126, %128 : vector<16x64xf32>
    %cst_49 = arith.constant 0.000000e+00 : f32
    %130 = vector.broadcast %cst_49 : f32 to vector<16x64xf32>
    %131 = arith.maximumf %129, %130 : vector<16x64xf32>
    %c0_50 = arith.constant 0 : index
    %c0_51 = arith.constant 0 : index
    %132 = vector.load %arg10[%c0_50, %c0_51] : memref<64x32xf32, #tpu.memory_space<vmem>>, vector<64x32xf32>
    %cst_52 = arith.constant dense<0.000000e+00> : vector<16x32xf32>
    %133 = tpu.matmul %131, %132, %cst_52 {dimension_numbers = #tpu.dot_dimension_numbers<[1], [0], [0], [1], [0, 0, 1, 1], [], []>} : vector<16x64xf32>, vector<64x32xf32>, vector<16x32xf32> -> vector<16x32xf32>
    %c0_53 = arith.constant 0 : index
    %c0_54 = arith.constant 0 : index
    %134 = vector.load %arg11[%c0_53, %c0_54] : memref<1x32xf32, #tpu.memory_space<vmem>>, vector<1x32xf32>
    %135 = vector.broadcast %134 : vector<1x32xf32> to vector<16x32xf32>
    %136 = arith.addf %133, %135 : vector<16x32xf32>
    %137 = arith.addf %124, %136 : vector<16x32xf32>
    %138 = vector.shape_cast %137 : vector<16x32xf32> to vector<2x8x32xf32>
    %c0_55 = arith.constant 0 : index
    %c0_56 = arith.constant 0 : index
    %c0_57 = arith.constant 0 : index
    %139 = vector.load %arg12[%c0_55, %c0_56, %c0_57] : memref<2x8x32xf32, #tpu.memory_space<vmem>>, vector<2x8x32xf32>
    tpu.vector_store %arg12[%c0_55, %c0_56, %c0_57], %138 {strides = array<i32>} : memref<2x8x32xf32, #tpu.memory_space<vmem>>, vector<2x8x32xf32>,
    return
  }
  func.func @transform_0(%arg0: i32) -> (i32, i32, i32) {
    %c0_i32 = arith.constant 0 : i32
    %c0_i32_0 = arith.constant 0 : i32
    %c0_i32_1 = arith.constant 0 : i32
    return %arg0, %c0_i32, %c0_i32_0 : i32, i32, i32
  }
  func.func @transform_1(%arg0: i32) -> (i32, i32) {
    %c0_i32 = arith.constant 0 : i32
    %c0_i32_0 = arith.constant 0 : i32
    %c0_i32_1 = arith.constant 0 : i32
    return %c0_i32, %c0_i32_0 : i32, i32
  }
  func.func @transform_2(%arg0: i32) -> (i32, i32) {
    %c0_i32 = arith.constant 0 : i32
    %c0_i32_0 = arith.constant 0 : i32
    %c0_i32_1 = arith.constant 0 : i32
    return %c0_i32, %c0_i32_0 : i32, i32
  }
  func.func @transform_3(%arg0: i32) -> (i32, i32) {
    %c0_i32 = arith.constant 0 : i32
    %c0_i32_0 = arith.constant 0 : i32
    %c0_i32_1 = arith.constant 0 : i32
    return %c0_i32, %c0_i32_0 : i32, i32
  }
  func.func @transform_4(%arg0: i32) -> (i32, i32) {
    %c0_i32 = arith.constant 0 : i32
    %c0_i32_0 = arith.constant 0 : i32
    %c0_i32_1 = arith.constant 0 : i32
    return %c0_i32, %c0_i32_0 : i32, i32
  }
  func.func @transform_5(%arg0: i32) -> (i32, i32) {
    %c0_i32 = arith.constant 0 : i32
    %c0_i32_0 = arith.constant 0 : i32
    %c0_i32_1 = arith.constant 0 : i32
    return %c0_i32, %c0_i32_0 : i32, i32
  }
  func.func @transform_6(%arg0: i32) -> (i32, i32) {
    %c0_i32 = arith.constant 0 : i32
    %c0_i32_0 = arith.constant 0 : i32
    %c0_i32_1 = arith.constant 0 : i32
    return %c0_i32, %c0_i32_0 : i32, i32
  }
  func.func @transform_7(%arg0: i32) -> (i32, i32) {
    %c0_i32 = arith.constant 0 : i32
    %c0_i32_0 = arith.constant 0 : i32
    %c0_i32_1 = arith.constant 0 : i32
    return %c0_i32, %c0_i32_0 : i32, i32
  }
  func.func @transform_8(%arg0: i32) -> (i32, i32) {
    %c0_i32 = arith.constant 0 : i32
    %c0_i32_0 = arith.constant 0 : i32
    %c0_i32_1 = arith.constant 0 : i32
    return %c0_i32, %c0_i32_0 : i32, i32
  }
  func.func @transform_9(%arg0: i32) -> (i32, i32) {
    %c0_i32 = arith.constant 0 : i32
    %c0_i32_0 = arith.constant 0 : i32
    %c0_i32_1 = arith.constant 0 : i32
    return %c0_i32, %c0_i32_0 : i32, i32
  }
  func.func @transform_10(%arg0: i32) -> (i32, i32) {
    %c0_i32 = arith.constant 0 : i32
    %c0_i32_0 = arith.constant 0 : i32
    %c0_i32_1 = arith.constant 0 : i32
    return %c0_i32, %c0_i32_0 : i32, i32
  }
  func.func @transform_11(%arg0: i32) -> (i32, i32, i32) {
    %c0_i32 = arith.constant 0 : i32
    %c0_i32_0 = arith.constant 0 : i32
    %c0_i32_1 = arith.constant 0 : i32
    return %arg0, %c0_i32, %c0_i32_0 : i32, i32, i32
  }
}

</mosaic_0001>

<llo_original>
// kernel: tpu_custom_call.1
$region0: #{tpu_custom_call.1}
  #allocation0 [shape = 'u32[]', space=smem, size = 0x4, offset = 0x4, fixed_abs, tag = 'smem constant byte address 0x4 - core index']
  #allocation1 [shape = 'u32[144,128]{1,0:T(1,128)}', space=vmem, size = 0x12000, scoped, tag = 'internal scratch']
  %s0 = inlined_call_operand.vmem [shape: f32[4,8,32], index: 0, kind: input, shape index: {}]
  %s1 = inlined_call_operand.vmem [shape: f32[1,32], index: 1, kind: input, shape index: {}]
  %s2 = inlined_call_operand.vmem [shape: f32[1,32], index: 2, kind: input, shape index: {}]
  %s3 = inlined_call_operand.vmem [shape: f32[32,96], index: 3, kind: input, shape index: {}]
  %s4 = inlined_call_operand.vmem [shape: f32[32,32], index: 4, kind: input, shape index: {}]
  %s5 = inlined_call_operand.hbm [shape: f32[1,32], index: 5, kind: input, shape index: {}]
  %s6 = inlined_call_operand.hbm [shape: f32[1,32], index: 6, kind: input, shape index: {}]
  %s7 = inlined_call_operand.hbm [shape: f32[32,64], index: 7, kind: input, shape index: {}]
  %s8 = inlined_call_operand.hbm [shape: f32[1,64], index: 8, kind: input, shape index: {}]
  %s9 = inlined_call_operand.vmem [shape: f32[64,32], index: 9, kind: input, shape index: {}]
  %s10 = inlined_call_operand.vmem [shape: f32[1,32], index: 10, kind: input, shape index: {}]
  %s11 = inlined_call_operand.hbm [shape: f32[4,8,32], index: 11, kind: output, shape index: {}]
  %s12 = sld [smem:[#allocation0]]
  $region93: #{tpu_custom_call.1} parent=0
    _
  %s14 = ssub.s32 1, %s12
  %s15 = scalar_select 0, %s14, %s12
  $region1: #{tpu_custom_call.1} parent=0
    #allocation2 [shape = 'u8[512]{0}', space=vmem, size = 0x400, scoped, tag = 'input window, operand 5, single buffered']
    #allocation3 [shape = 's32[2]{0}', space=sflag, size = 0x8, scoped, tag = 'scoped memory for tpu_custom_call.1']
    #allocation4 [shape = 's32[2]{0}', space=sflag, size = 0x8, scoped, tag = 'scoped memory for tpu_custom_call.1']
    #allocation5 [shape = 'u8[512]{0}', space=vmem, size = 0x400, scoped, tag = 'input window, operand 6, single buffered']
    #allocation6 [shape = 's32[1]{0}', space=sflag, size = 0x4, scoped, tag = 'scoped memory for tpu_custom_call.1']
    #allocation7 [shape = 'u8[16384]{0}', space=vmem, size = 0x4000, scoped, tag = 'input window, operand 7, single buffered']
    #allocation8 [shape = 'u8[512]{0}', space=vmem, size = 0x400, scoped, tag = 'input window, operand 8, single buffered']
    #allocation9 [shape = 's32[1]{0}', space=sflag, size = 0x4, scoped, tag = 'scoped memory for tpu_custom_call.1']
    #allocation10 [shape = 'u8[16384]{0}', space=vmem, size = 0x4000, scoped, tag = 'output window, operand 0']
    %16 = vsyncpa [#allocation3], 0
    %17 = vsyncpa [#allocation6], 0
    %18 = vsyncpa [#allocation9], 0
    %19 = vsyncpa [#allocation4], 0
    %s20 = scalar_lea.sflag [#allocation4], 1
    %21 = vsyncpa %s20, 0
    loop: start=0, step=1, limit=4
    $region2: #{tpu_custom_call.1} parent=1 // loop_pre_header
      _
    $region3: #{tpu_custom_call.1} parent=1 // loop_header
      %s23 = sphi 0, %s27
      %p24 = scmp.ge.s32.totalorder %s23, 4
      %s33 = sphi 0, %s35
      %s36 = sphi 0, %s33
      %s37 = sphi 0, %s36
      %s53 = sphi 0, %s37
      %s57 = sphi 0, %s57
      %s59 = sphi 0, %s57
      %s60 = sphi 0, %s59
      %s74 = sphi 0, %s60
      %s78 = sphi 0, %s78
      %s80 = sphi 0, %s78
      %s81 = sphi 0, %s80
      %s95 = sphi 0, %s81
      %s99 = sphi 0, %s99
      %s101 = sphi 0, %s99
      %s102 = sphi 0, %s101
      %s116 = sphi 0, %s102
      %s120 = sphi 0, %s120
      %s122 = sphi 0, %s120
      %s123 = sphi 0, %s122
      %s137 = sphi 0, %s123
      %s141 = sphi 0, %s141
      %s143 = sphi 0, %s141
      %s144 = sphi 0, %s143
      %s158 = sphi 0, %s144
      %s162 = sphi 0, %s162
      %s164 = sphi 0, %s162
      %s165 = sphi 0, %s164
      %s179 = sphi 0, %s165
      %s183 = sphi 0, %s183
      %s185 = sphi 0, %s183
      %s186 = sphi 0, %s185
      %s200 = sphi 0, %s186
      %s204 = sphi 0, %s204
      %s206 = sphi 0, %s204
      %s207 = sphi 0, %s206
      %s221 = sphi 0, %s207
      %s225 = sphi 0, %s225
      %s227 = sphi 0, %s225
      %s228 = sphi 0, %s227
      %s242 = sphi 0, %s228
      %s246 = sphi 0, %s246
      %s248 = sphi 0, %s246
      %s249 = sphi 0, %s248
      %s263 = sphi 0, %s249
      %s269 = sphi 0, %s271
      %s272 = sphi 0, %s269
      %s273 = sphi 0, %s272
      %s289 = sphi 0, %s273
    $region4: #{tpu_custom_call.1} parent=1 // loop_header_branch
      %26 = sbr.rel (%p24) target = $region8
    $region5: #{tpu_custom_call.1} parent=1 // loop_body
      %s28 = ssub.s32 %s23, 1
      %s29 = ssub.s32 %s23, 2
      %s30 = sadd.s32 %s23, 1
      %s31 = ssub.s32 %s23, %s30
      %p32 = scmp.eq.s32.totalorder %s31, 0
      %s34 = sadd.s32 %s33, 1
      %s35 = scalar_select %p32, %s33, %s34
      %p38 = pneg %p32
      %p39 = scmp.eq.s32.totalorder %s23, 1
      %p40 = por %p38, %p39
      %p41 = scmp.ne.s32.totalorder %s33, %s36
      %p42 = scmp.eq.s32.totalorder %s23, 0
      %p43 = por %p41, %p42
      %p44 = scmp.ne.s32.totalorder %s33, %s36
      %p45 = scmp.eq.s32.totalorder %s28, 1
      %p46 = por %p44, %p45
      %p47 = scmp.ne.s32.totalorder %s36, %s37
      %p48 = scmp.eq.s32.totalorder %s28, 0
      %p49 = por %p47, %p48
      %p50 = scmp.ne.s32.totalorder %s36, %s37
      %p51 = scmp.eq.s32.totalorder %s29, 1
      %p52 = por %p50, %p51
      %p54 = scmp.ne.s32.totalorder %s37, %s53
      %p55 = scmp.eq.s32.totalorder %s29, 0
      %p56 = por %p54, %p55
      %s58 = sadd.s32 %s57, 1
      %p61 = scmp.eq.s32.totalorder %s23, 1
      %p62 = scmp.ne.s32.totalorder %s57, %s59
      %p63 = scmp.eq.s32.totalorder %s23, 0
      %p64 = por %p62, %p63
      %p65 = scmp.ne.s32.totalorder %s57, %s59
      %p66 = scmp.eq.s32.totalorder %s28, 1
      %p67 = por %p65, %p66
      %p68 = scmp.ne.s32.totalorder %s59, %s60
      %p69 = scmp.eq.s32.totalorder %s28, 0
      %p70 = por %p68, %p69
      %p71 = scmp.ne.s32.totalorder %s59, %s60
      %p72 = scmp.eq.s32.totalorder %s29, 1
      %p73 = por %p71, %p72
      %p75 = scmp.ne.s32.totalorder %s60, %s74
      %p76 = scmp.eq.s32.totalorder %s29, 0
      %p77 = por %p75, %p76
      %s79 = sadd.s32 %s78, 1
      %p82 = scmp.eq.s32.totalorder %s23, 1
      %p83 = scmp.ne.s32.totalorder %s78, %s80
      %p84 = scmp.eq.s32.totalorder %s23, 0
      %p85 = por %p83, %p84
      %p86 = scmp.ne.s32.totalorder %s78, %s80
      %p87 = scmp.eq.s32.totalorder %s28, 1
      %p88 = por %p86, %p87
      %p89 = scmp.ne.s32.totalorder %s80, %s81
      %p90 = scmp.eq.s32.totalorder %s28, 0
      %p91 = por %p89, %p90
      %p92 = scmp.ne.s32.totalorder %s80, %s81
      %p93 = scmp.eq.s32.totalorder %s29, 1
      %p94 = por %p92, %p93
      %p96 = scmp.ne.s32.totalorder %s81, %s95
      %p97 = scmp.eq.s32.totalorder %s29, 0
      %p98 = por %p96, %p97
      %s100 = sadd.s32 %s99, 1
      %p103 = scmp.eq.s32.totalorder %s23, 1
      %p104 = scmp.ne.s32.totalorder %s99, %s101
      %p105 = scmp.eq.s32.totalorder %s23, 0
      %p106 = por %p104, %p105
      %p107 = scmp.ne.s32.totalorder %s99, %s101
      %p108 = scmp.eq.s32.totalorder %s28, 1
      %p109 = por %p107, %p108
      %p110 = scmp.ne.s32.totalorder %s101, %s102
      %p111 = scmp.eq.s32.totalorder %s28, 0
      %p112 = por %p110, %p111
      %p113 = scmp.ne.s32.totalorder %s101, %s102
      %p114 = scmp.eq.s32.totalorder %s29, 1
      %p115 = por %p113, %p114
      %p117 = scmp.ne.s32.totalorder %s102, %s116
      %p118 = scmp.eq.s32.totalorder %s29, 0
      %p119 = por %p117, %p118
      %s121 = sadd.s32 %s120, 1
      %p124 = scmp.eq.s32.totalorder %s23, 1
      %p125 = scmp.ne.s32.totalorder %s120, %s122
      %p126 = scmp.eq.s32.totalorder %s23, 0
      %p127 = por %p125, %p126
      %p128 = scmp.ne.s32.totalorder %s120, %s122
      %p129 = scmp.eq.s32.totalorder %s28, 1
      %p130 = por %p128, %p129
      %p131 = scmp.ne.s32.totalorder %s122, %s123
      %p132 = scmp.eq.s32.totalorder %s28, 0
      %p133 = por %p131, %p132
      %p134 = scmp.ne.s32.totalorder %s122, %s123
      %p135 = scmp.eq.s32.totalorder %s29, 1
      %p136 = por %p134, %p135
      %p138 = scmp.ne.s32.totalorder %s123, %s137
      %p139 = scmp.eq.s32.totalorder %s29, 0
      %p140 = por %p138, %p139
      %s142 = sadd.s32 %s141, 1
      %p145 = scmp.eq.s32.totalorder %s23, 1
      %p146 = scmp.ne.s32.totalorder %s141, %s143
      %p147 = scmp.eq.s32.totalorder %s23, 0
      %p148 = por %p146, %p147
      %p149 = scmp.ne.s32.totalorder %s141, %s143
      %p150 = scmp.eq.s32.totalorder %s28, 1
      %p151 = por %p149, %p150
      %p152 = scmp.ne.s32.totalorder %s143, %s144
      %p153 = scmp.eq.s32.totalorder %s28, 0
      %p154 = por %p152, %p153
      %p155 = scmp.ne.s32.totalorder %s143, %s144
      %p156 = scmp.eq.s32.totalorder %s29, 1
      %p157 = por %p155, %p156
      %p159 = scmp.ne.s32.totalorder %s144, %s158
      %p160 = scmp.eq.s32.totalorder %s29, 0
      %p161 = por %p159, %p160
      %s163 = sadd.s32 %s162, 1
      %p166 = scmp.eq.s32.totalorder %s23, 1
      %p167 = scmp.ne.s32.totalorder %s162, %s164
      %p168 = scmp.eq.s32.totalorder %s23, 0
      %p169 = por %p167, %p168
      %p170 = scmp.ne.s32.totalorder %s162, %s164
      %p171 = scmp.eq.s32.totalorder %s28, 1
      %p172 = por %p170, %p171
      %p173 = scmp.ne.s32.totalorder %s164, %s165
      %p174 = scmp.eq.s32.totalorder %s28, 0
      %p175 = por %p173, %p174
      %p176 = scmp.ne.s32.totalorder %s164, %s165
      %p177 = scmp.eq.s32.totalorder %s29, 1
      %p178 = por %p176, %p177
      %p180 = scmp.ne.s32.totalorder %s165, %s179
      %p181 = scmp.eq.s32.totalorder %s29, 0
      %p182 = por %p180, %p181
      %s184 = sadd.s32 %s183, 1
      %p187 = scmp.eq.s32.totalorder %s23, 1
      %p188 = scmp.ne.s32.totalorder %s183, %s185
      %p189 = scmp.eq.s32.totalorder %s23, 0
      %p190 = por %p188, %p189
      %p191 = scmp.ne.s32.totalorder %s183, %s185
      %p192 = scmp.eq.s32.totalorder %s28, 1
      %p193 = por %p191, %p192
      %p194 = scmp.ne.s32.totalorder %s185, %s186
      %p195 = scmp.eq.s32.totalorder %s28, 0
      %p196 = por %p194, %p195
      %p197 = scmp.ne.s32.totalorder %s185, %s186
      %p198 = scmp.eq.s32.totalorder %s29, 1
      %p199 = por %p197, %p198
      %p201 = scmp.ne.s32.totalorder %s186, %s200
      %p202 = scmp.eq.s32.totalorder %s29, 0
      %p203 = por %p201, %p202
      %s205 = sadd.s32 %s204, 1
      %p208 = scmp.eq.s32.totalorder %s23, 1
      %p209 = scmp.ne.s32.totalorder %s204, %s206
      %p210 = scmp.eq.s32.totalorder %s23, 0
      %p211 = por %p209, %p210
      %p212 = scmp.ne.s32.totalorder %s204, %s206
      %p213 = scmp.eq.s32.totalorder %s28, 1
      %p214 = por %p212, %p213
      %p215 = scmp.ne.s32.totalorder %s206, %s207
      %p216 = scmp.eq.s32.totalorder %s28, 0
      %p217 = por %p215, %p216
      %p218 = scmp.ne.s32.totalorder %s206, %s207
      %p219 = scmp.eq.s32.totalorder %s29, 1
      %p220 = por %p218, %p219
      %p222 = scmp.ne.s32.totalorder %s207, %s221
      %p223 = scmp.eq.s32.totalorder %s29, 0
      %p224 = por %p222, %p223
      %s226 = sadd.s32 %s225, 1
      %p229 = scmp.eq.s32.totalorder %s23, 1
      %p230 = scmp.ne.s32.totalorder %s225, %s227
      %p231 = scmp.eq.s32.totalorder %s23, 0
      %p232 = por %p230, %p231
      %p233 = scmp.ne.s32.totalorder %s225, %s227
      %p234 = scmp.eq.s32.totalorder %s28, 1
      %p235 = por %p233, %p234
      %p236 = scmp.ne.s32.totalorder %s227, %s228
      %p237 = scmp.eq.s32.totalorder %s28, 0
      %p238 = por %p236, %p237
      %p239 = scmp.ne.s32.totalorder %s227, %s228
      %p240 = scmp.eq.s32.totalorder %s29, 1
      %p241 = por %p239, %p240
      %p243 = scmp.ne.s32.totalorder %s228, %s242
      %p244 = scmp.eq.s32.totalorder %s29, 0
      %p245 = por %p243, %p244
      %s247 = sadd.s32 %s246, 1
      %p250 = scmp.eq.s32.totalorder %s23, 1
      %p251 = scmp.ne.s32.totalorder %s246, %s248
      %p252 = scmp.eq.s32.totalorder %s23, 0
      %p253 = por %p251, %p252
      %p254 = scmp.ne.s32.totalorder %s246, %s248
      %p255 = scmp.eq.s32.totalorder %s28, 1
      %p256 = por %p254, %p255
      %p257 = scmp.ne.s32.totalorder %s248, %s249
      %p258 = scmp.eq.s32.totalorder %s28, 0
      %p259 = por %p257, %p258
      %p260 = scmp.ne.s32.totalorder %s248, %s249
      %p261 = scmp.eq.s32.totalorder %s29, 1
      %p262 = por %p260, %p261
      %p264 = scmp.ne.s32.totalorder %s249, %s263
      %p265 = scmp.eq.s32.totalorder %s29, 0
      %p266 = por %p264, %p265
      %s267 = ssub.s32 %s23, %s30
      %p268 = scmp.eq.s32.totalorder %s267, 0
      %s270 = sadd.s32 %s269, 1
      %s271 = scalar_select %p268, %s269, %s270
      %p274 = pneg %p268
      %p275 = scmp.eq.s32.totalorder %s23, 1
      %p276 = por %p274, %p275
      %p277 = scmp.ne.s32.totalorder %s269, %s272
      %p278 = scmp.eq.s32.totalorder %s23, 0
      %p279 = por %p277, %p278
      %p280 = scmp.ne.s32.totalorder %s269, %s272
      %p281 = scmp.eq.s32.totalorder %s28, 1
      %p282 = por %p280, %p281
      %p283 = scmp.ne.s32.totalorder %s272, %s273
      %p284 = scmp.eq.s32.totalorder %s28, 0
      %p285 = por %p283, %p284
      %p286 = scmp.ne.s32.totalorder %s272, %s273
      %p287 = scmp.eq.s32.totalorder %s29, 1
      %p288 = por %p286, %p287
      %p290 = scmp.ne.s32.totalorder %s273, %s289
      %p291 = scmp.eq.s32.totalorder %s29, 0
      %p292 = por %p290, %p291
      %p293 = scmp.le.s32.totalorder 1, %s23
      %p294 = scmp.lt.s32.totalorder %s23, 3
      %p295 = pnand %p293, %p294
      %p296 = pneg %p295
      // Predicated region
      $region9: #{tpu_custom_call.1} parent=5 // pred_check
        _
      $region10: #{tpu_custom_call.1} parent=5 // pred_check_branch
        %298 = sbr.rel (%p295) target = $region12
      $region11: #{tpu_custom_call.1} parent=5 // pred_region
        %s299 = ssub.s32 %s23, 1
        // Predicated region
        $region13: #{tpu_custom_call.1} parent=11 // pred_check
          %p300 = pneg %p70
        $region14: #{tpu_custom_call.1} parent=11 // pred_check_branch
          %302 = sbr.rel (%p300) target = $region16
        $region15: #{tpu_custom_call.1} parent=11 // pred_region
          _
        $region16: #{tpu_custom_call.1} parent=11 // pred_fallthru
          _
        // Predicated region
        $region17: #{tpu_custom_call.1} parent=11 // pred_check
          %p303 = pneg %p91
        $region18: #{tpu_custom_call.1} parent=11 // pred_check_branch
          %305 = sbr.rel (%p303) target = $region20
        $region19: #{tpu_custom_call.1} parent=11 // pred_region
          _
        $region20: #{tpu_custom_call.1} parent=11 // pred_fallthru
          _
        // Predicated region
        $region21: #{tpu_custom_call.1} parent=11 // pred_check
          %p306 = pneg %p112
        $region22: #{tpu_custom_call.1} parent=11 // pred_check_branch
          %308 = sbr.rel (%p306) target = $region24
        $region23: #{tpu_custom_call.1} parent=11 // pred_region
          _
        $region24: #{tpu_custom_call.1} parent=11 // pred_fallthru
          _
        // Predicated region
        $region25: #{tpu_custom_call.1} parent=11 // pred_check
          %p309 = pneg %p133
        $region26: #{tpu_custom_call.1} parent=11 // pred_check_branch
          %311 = sbr.rel (%p309) target = $region28
        $region27: #{tpu_custom_call.1} parent=11 // pred_region
          _
        $region28: #{tpu_custom_call.1} parent=11 // pred_fallthru
          _
        // Predicated region
        $region29: #{tpu_custom_call.1} parent=11 // pred_check
          %p312 = pneg %p154
        $region30: #{tpu_custom_call.1} parent=11 // pred_check_branch
          %314 = sbr.rel (%p312) target = $region32
        $region31: #{tpu_custom_call.1} parent=11 // pred_region
          %s316 = ssub.s32 16, 16
          %317 = vsyncadd [#allocation3], %s316
          %s319 = sshll.u32 [#allocation2], 4
          %s320 = int_to_ptr.vmem [resolvable:$true] %s319
          %322 = dma.hbm_to_vmem [thread:$0]  %s5, 16, %s320, [#allocation3]
        $region32: #{tpu_custom_call.1} parent=11 // pred_fallthru
          _
        // Predicated region
        $region33: #{tpu_custom_call.1} parent=11 // pred_check
          %p323 = pneg %p175
        $region34: #{tpu_custom_call.1} parent=11 // pred_check_branch
          %325 = sbr.rel (%p323) target = $region36
        $region35: #{tpu_custom_call.1} parent=11 // pred_region
          %s327 = ssub.s32 16, 16
          %328 = vsyncadd [#allocation6], %s327
          %s330 = sshll.u32 [#allocation5], 4
          %s331 = int_to_ptr.vmem [resolvable:$true] %s330
          %333 = dma.hbm_to_vmem [thread:$0]  %s6, 16, %s331, [#allocation6]
        $region36: #{tpu_custom_call.1} parent=11 // pred_fallthru
          _
        // Predicated region
        $region37: #{tpu_custom_call.1} parent=11 // pred_check
          %p334 = pneg %p196
        $region38: #{tpu_custom_call.1} parent=11 // pred_check_branch
          %336 = sbr.rel (%p334) target = $region40
        $region39: #{tpu_custom_call.1} parent=11 // pred_region
          %s338 = ssub.s32 512, 512
          %339 = vsyncadd [#allocation6], %s338
          %s340 = sshll.u32 [#allocation7], 4
          %s341 = int_to_ptr.vmem [resolvable:$true] %s340
          %346 = dma.hbm_to_vmem [thread:$0]  %s7, 512, %s341, [#allocation6], 128, 128, 8
        $region40: #{tpu_custom_call.1} parent=11 // pred_fallthru
          _
        // Predicated region
        $region41: #{tpu_custom_call.1} parent=11 // pred_check
          %p347 = pneg %p217
        $region42: #{tpu_custom_call.1} parent=11 // pred_check_branch
          %349 = sbr.rel (%p347) target = $region44
        $region43: #{tpu_custom_call.1} parent=11 // pred_region
          %s351 = ssub.s32 16, 16
          %352 = vsyncadd [#allocation9], %s351
          %s354 = sshll.u32 [#allocation8], 4
          %s355 = int_to_ptr.vmem [resolvable:$true] %s354
          %357 = dma.hbm_to_vmem [thread:$0]  %s8, 16, %s355, [#allocation9]
        $region44: #{tpu_custom_call.1} parent=11 // pred_fallthru
          _
        // Predicated region
        $region45: #{tpu_custom_call.1} parent=11 // pred_check
          %p358 = pneg %p238
        $region46: #{tpu_custom_call.1} parent=11 // pred_check_branch
          %360 = sbr.rel (%p358) target = $region48
        $region47: #{tpu_custom_call.1} parent=11 // pred_region
          _
        $region48: #{tpu_custom_call.1} parent=11 // pred_fallthru
          _
        // Predicated region
        $region49: #{tpu_custom_call.1} parent=11 // pred_check
          %p361 = pneg %p259
        $region50: #{tpu_custom_call.1} parent=11 // pred_check_branch
          %363 = sbr.rel (%p361) target = $region52
        $region51: #{tpu_custom_call.1} parent=11 // pred_region
          _
        $region52: #{tpu_custom_call.1} parent=11 // pred_fallthru
          _
      $region12: #{tpu_custom_call.1} parent=5 // pred_fallthru
        _
      %p364 = scmp.lt.s32.totalorder %s23, 2
      // Predicated region
      $region53: #{tpu_custom_call.1} parent=5 // pred_check
        %p365 = pneg %p364
      $region54: #{tpu_custom_call.1} parent=5 // pred_check_branch
        %367 = sbr.rel (%p365) target = $region56
      $region55: #{tpu_custom_call.1} parent=5 // pred_region
        // Predicated region
        $region57: #{tpu_custom_call.1} parent=55 // pred_check
          %p368 = pneg %p43
        $region58: #{tpu_custom_call.1} parent=55 // pred_check_branch
          %370 = sbr.rel (%p368) target = $region60
        $region59: #{tpu_custom_call.1} parent=55 // pred_region
          %s371 = smul.u32 2, %s23
          %p372 = scmp.lt.s32.totalorder %s371, 3
          %s373 = scalar_select %p372, %s371, 3
          %s374 = smul.addr %s373, 8
          %s375 = scalar_lea.vmem %s0, %s374
          %s376 = smul.u32 2, %s23
        $region60: #{tpu_custom_call.1} parent=55 // pred_fallthru
          _
      $region56: #{tpu_custom_call.1} parent=5 // pred_fallthru
        _
      %p377 = scmp.le.s32.totalorder 1, %s23
      %p378 = scmp.lt.s32.totalorder %s23, 3
      %p379 = pnand %p377, %p378
      %p380 = pneg %p379
      // Predicated region
      $region61: #{tpu_custom_call.1} parent=5 // pred_check
        _
      $region62: #{tpu_custom_call.1} parent=5 // pred_check_branch
        %382 = sbr.rel (%p379) target = $region64
      $region63: #{tpu_custom_call.1} parent=5 // pred_region
        %s383 = ssub.s32 %s23, 1
        // Predicated region
        $region65: #{tpu_custom_call.1} parent=63 // pred_check
          %p384 = pneg %p154
        $region66: #{tpu_custom_call.1} parent=63 // pred_check_branch
          %386 = sbr.rel (%p384) target = $region68
        $region67: #{tpu_custom_call.1} parent=63 // pred_region
          %387 = dma.done [#allocation3], 16
        $region68: #{tpu_custom_call.1} parent=63 // pred_fallthru
          _
        // Predicated region
        $region69: #{tpu_custom_call.1} parent=63 // pred_check
          %p388 = pneg %p175
        $region70: #{tpu_custom_call.1} parent=63 // pred_check_branch
          %390 = sbr.rel (%p388) target = $region72
        $region71: #{tpu_custom_call.1} parent=63 // pred_region
          %391 = dma.done [#allocation6], 16
        $region72: #{tpu_custom_call.1} parent=63 // pred_fallthru
          _
        // Predicated region
        $region73: #{tpu_custom_call.1} parent=63 // pred_check
          %p392 = pneg %p196
        $region74: #{tpu_custom_call.1} parent=63 // pred_check_branch
          %394 = sbr.rel (%p392) target = $region76
        $region75: #{tpu_custom_call.1} parent=63 // pred_region
          %395 = dma.done [#allocation6], 512
        $region76: #{tpu_custom_call.1} parent=63 // pred_fallthru
          _
        // Predicated region
        $region77: #{tpu_custom_call.1} parent=63 // pred_check
          %p396 = pneg %p217
        $region78: #{tpu_custom_call.1} parent=63 // pred_check_branch
          %398 = sbr.rel (%p396) target = $region80
        $region79: #{tpu_custom_call.1} parent=63 // pred_region
          %399 = dma.done [#allocation9], 16
        $region80: #{tpu_custom_call.1} parent=63 // pred_fallthru
          _
        %s400 = smul.u32 2, %s28
        %p401 = scmp.lt.s32.totalorder %s400, 3
        %s402 = scalar_select %p401, %s400, 3
        %s403 = smul.addr %s402, 8
        %s404 = scalar_lea.vmem %s0, %s403
        %p405 = pneg %p49
        %p406 = pneg %p46
        %p407 = pneg %p70
        %p408 = pneg %p67
        %p409 = pneg %p91
        %p410 = pneg %p88
        %p411 = pneg %p112
        %p412 = pneg %p109
        %p413 = pneg %p133
        %p414 = pneg %p130
        %p415 = pneg %p154
        %p416 = pneg %p151
        %p417 = pneg %p175
        %p418 = pneg %p172
        %p419 = pneg %p196
        %p420 = pneg %p193
        %p421 = pneg %p217
        %p422 = pneg %p214
        %p423 = pneg %p238
        %p424 = pneg %p235
        %p425 = pneg %p259
        %p426 = pneg %p256
        %p427 = pneg %p285
        %p428 = pneg %p282
        %s429 = sand.u32 %s272, 1
        %s430 = scalar_lea.sflag [#allocation4], %s429
        %s431 = sand.u32 %s272, 1
        %s432 = smul.addr %s431, 16
        %s433 = scalar_lea.vmem [#allocation10], %s432
        %s434 = smul.u32 2, %s28
        %p435 = scmp.lt.s32.totalorder %s434, 3
        %s436 = scalar_select %p435, %s434, 3
        %s437 = smul.addr %s436, 8
        %s438 = scalar_lea.vmem %s0, %s437
        %s439 = smul.u32 2, %s28
        %s440 = smul.u32 2, %s28
        %v441 = vld [vmem:[%s438] sm:$0xff]
        %v442 = vld [vmem:[%s438 + $0x8] sm:$0xff]
        %v443 = vld [vmem:[%s1] sm:$0x1]
        %v444 = vld [vmem:[%s2] sm:$0x1]
        %vm445 = vcmask 261120
        %v446 = vsel %vm445, %v441, 0.0
        %447 = vadd.xlane.f32.xlu0 %v446
        %v448 = vpop.xlane.xlu0 %447
        %v449 = vsel %vm445, %v442, 0.0
        %450 = vadd.xlane.f32.xlu0 %v449
        %v451 = vpop.xlane.xlu0 %450
        %v452 = vrcp.pop 32.0
        %v453 = vmul.f32 %v448, %v452
        %v454 = vmul.f32 %v451, %v452
        %v455 = vsub.f32 %v441, %v453
        %v456 = vsub.f32 %v442, %v454
        %v457 = vmul.f32 %v455, %v455
        %v458 = vmul.f32 %v456, %v456
        %v459 = vsel %vm445, %v457, 0.0
        %460 = vadd.xlane.f32.xlu0 %v459
        %v461 = vpop.xlane.xlu0 %460
        %v462 = vsel %vm445, %v458, 0.0
        %463 = vadd.xlane.f32.xlu0 %v462
        %v464 = vpop.xlane.xlu0 %463
        %v465 = vmul.f32 %v461, %v452
        %v466 = vmul.f32 %v464, %v452
        %v467 = vadd.f32 %v465, 1e-05
        %v468 = vadd.f32 %v466, 1e-05
        %v469 = vrsqrt.pop %v467
        %v470 = vrsqrt.pop %v468
        %v471 = vmul.f32 %v455, %v469
        %v472 = vmul.f32 %v456, %v470
        %v474 = vlaneseq
        %v475 = vshrl.u32 %v474, 7
        %v476 = vsub.s32 0, %v475
        %v477 = vrot.slane %v443, %v476
        %v479 = vmul.f32 %v471, %v477
        %v480 = vmul.f32 %v472, %v477
        %v482 = vlaneseq
        %v483 = vshrl.u32 %v482, 7
        %v484 = vsub.s32 0, %v483
        %v485 = vrot.slane %v444, %v484
        %v487 = vadd.f32 %v479, %v485
        %v488 = vadd.f32 %v480, %v485
        %v489 = vld [vmem:[%s3] sm:$0xff]
        %v490 = vld [vmem:[%s3 + $0x8] sm:$0xff]
        %v491 = vld [vmem:[%s3 + $0x10] sm:$0xff]
        %v492 = vld [vmem:[%s3 + $0x18] sm:$0xff]
        %v494 = vsel %vm445, %v487, 0
        %v497 = vsel %vm445, %v488, 0
        %499 = vmatprep.subr.mxu0 0.0
        %500 = vmatpush1.msra.mxu0 %v489
        %501 = vmatprep.subr.mxu0 0.0
        %502 = vmatpush1.msra.mxu0 %v490
        %503 = vmatprep.subr.mxu0 0.0
        %504 = vmatpush1.msra.mxu0 %v491
        %505 = vmatprep.subr.mxu0 0.0
        %506 = vmatpush1.msra.mxu0 %v492
        %507 = vmatprep.subr.mxu0 0.0
        %508 = vmatpush1.msra.mxu0 0.0
        %509 = vmatprep.subr.mxu0 0.0
        %510 = vmatpush1.msra.mxu0 0.0
        %511 = vmatprep.subr.mxu0 0.0
        %512 = vmatpush1.msra.mxu0 0.0
        %513 = vmatprep.subr.mxu0 0.0
        %514 = vmatpush1.msra.mxu0 0.0
        %515 = vmatprep.subr.mxu0 0.0
        %516 = vmatpush1.msra.mxu0 0.0
        %517 = vmatprep.subr.mxu0 0.0
        %518 = vmatpush1.msra.mxu0 0.0
        %519 = vmatprep.subr.mxu0 0.0
        %520 = vmatpush1.msra.mxu0 0.0
        %521 = vmatprep.subr.mxu0 0.0
        %522 = vmatpush1.msra.mxu0 0.0
        %523 = vmatprep.subr.mxu0 0.0
        %524 = vmatpush1.msra.mxu0 0.0
        %525 = vmatprep.subr.mxu0 0.0
        %526 = vmatpush1.msra.mxu0 0.0
        %527 = vmatprep.subr.mxu0 0.0
        %528 = vmatpush1.msra.mxu0 0.0
        %529 = vmatprep.subr.mxu0 0.0
        %530 = vmatpush1.msra.mxu0 0.0
        %531 = vmatprep.subr.mxu0 0.0
        %532 = vmatpush1.msra.mxu0 0.0
        %533 = vmatprep.subr.mxu0 0.0
        %534 = vmatpush1.msra.mxu0 0.0
        %535 = vmatprep.subr.mxu0 0.0
        %536 = vmatpush1.msra.mxu0 0.0
        %537 = vmatprep.subr.mxu0 0.0
        %538 = vmatpush1.msra.mxu0 0.0
        %539 = vmatprep.subr.mxu0 0.0
        %540 = vmatpush1.msra.mxu0 0.0
        %541 = vmatprep.subr.mxu0 0.0
        %542 = vmatpush1.msra.mxu0 0.0
        %543 = vmatprep.subr.mxu0 0.0
        %544 = vmatpush1.msra.mxu0 0.0
        %545 = vmatprep.subr.mxu0 0.0
        %546 = vmatpush1.msra.mxu0 0.0
        %547 = vmatprep.subr.mxu0 0.0
        %548 = vmatpush1.msra.mxu0 0.0
        %549 = vmatprep.subr.mxu0 0.0
        %550 = vmatpush1.msra.mxu0 0.0
        %551 = vmatprep.subr.mxu0 0.0
        %552 = vmatpush1.msra.mxu0 0.0
        %553 = vmatprep.subr.mxu0 0.0
        %554 = vmatpush1.msra.mxu0 0.0
        %555 = vmatprep.subr.mxu0 0.0
        %556 = vmatpush1.msra.mxu0 0.0
        %557 = vmatprep.subr.mxu0 0.0
        %558 = vmatpush1.msra.mxu0 0.0
        %559 = vmatprep.subr.mxu0 0.0
        %560 = vmatpush1.msra.mxu0 0.0
        %561 = vmatprep.subr.mxu0 0.0
        %562 = vmatpush1.msra.mxu0 0.0
        %563 = vmatprep.mubr.f32.mxu0 0.0
        %564 = vmatmul.mubr.f32.gmra.mrb[0].mxu0 %v494
        %v565 = vpop.f32.mrb[0].mxu0
        %v566 = vadd.f32 0.0, %v565
        %v567 = vpop.f32.mrb[0].mxu0
        %568 = vmatprep.mubr.f32.mxu0 0.0
        %569 = vmatmul.mubr.f32.gmra.mrb[0].mxu0 %v497
        %v570 = vpop.f32.mrb[0].mxu0
        %v571 = vadd.f32 0.0, %v570
        %v572 = vpop.f32.mrb[0].mxu0
        %573 = vdwg.mxu0
        %v574 = vmax.f32 %v566, 0.0
        %v575 = vmax.f32 %v571, 0.0
        %v576 = vmul.f32 %v574, 0.35355338
        %v577 = vmul.f32 %v575, 0.35355338
        %579 = vrot.lane.b32.xlu0 %v574, 96
        %v580 = vpop.permute.xlu0 %579
        %vm581 = vcmask 64512
        %v583 = vsel %vm581, %v576, 0
        %v585 = vsel %vm581, %v580, 0
        %587 = vmatprep.subr.mxu0 0.0
        %588 = vmatpush1.xpose.msra.mxu0 %v585
        %589 = vmatprep.subr.mxu0 0.0
        %590 = vmatpush1.xpose.msra.mxu0 0.0
        %591 = vmatprep.subr.mxu0 0.0
        %592 = vmatpush1.xpose.msra.mxu0 0.0
        %593 = vmatprep.subr.mxu0 0.0
        %594 = vmatpush1.xpose.msra.mxu0 0.0
        %595 = vmatprep.subr.mxu0 0.0
        %596 = vmatpush1.xpose.msra.mxu0 0.0
        %597 = vmatprep.subr.mxu0 0.0
        %598 = vmatpush1.xpose.msra.mxu0 0.0
        %599 = vmatprep.subr.mxu0 0.0
        %600 = vmatpush1.xpose.msra.mxu0 0.0
        %601 = vmatprep.subr.mxu0 0.0
        %602 = vmatpush1.xpose.msra.mxu0 0.0
        %603 = vmatprep.subr.mxu0 0.0
        %604 = vmatpush1.xpose.msra.mxu0 0.0
        %605 = vmatprep.subr.mxu0 0.0
        %606 = vmatpush1.xpose.msra.mxu0 0.0
        %607 = vmatprep.subr.mxu0 0.0
        %608 = vmatpush1.xpose.msra.mxu0 0.0
        %609 = vmatprep.subr.mxu0 0.0
        %610 = vmatpush1.xpose.msra.mxu0 0.0
        %611 = vmatprep.subr.mxu0 0.0
        %612 = vmatpush1.xpose.msra.mxu0 0.0
        %613 = vmatprep.subr.mxu0 0.0
        %614 = vmatpush1.xpose.msra.mxu0 0.0
        %615 = vmatprep.subr.mxu0 0.0
        %616 = vmatpush1.xpose.msra.mxu0 0.0
        %617 = vmatprep.subr.mxu0 0.0
        %618 = vmatpush1.xpose.msra.mxu0 0.0
        %619 = vmatprep.subr.mxu0 0.0
        %620 = vmatpush1.xpose.msra.mxu0 0.0
        %621 = vmatprep.subr.mxu0 0.0
        %622 = vmatpush1.xpose.msra.mxu0 0.0
        %623 = vmatprep.subr.mxu0 0.0
        %624 = vmatpush1.xpose.msra.mxu0 0.0
        %625 = vmatprep.subr.mxu0 0.0
        %626 = vmatpush1.xpose.msra.mxu0 0.0
        %627 = vmatprep.subr.mxu0 0.0
        %628 = vmatpush1.xpose.msra.mxu0 0.0
        %629 = vmatprep.subr.mxu0 0.0
        %630 = vmatpush1.xpose.msra.mxu0 0.0
        %631 = vmatprep.subr.mxu0 0.0
        %632 = vmatpush1.xpose.msra.mxu0 0.0
        %633 = vmatprep.subr.mxu0 0.0
        %634 = vmatpush1.xpose.msra.mxu0 0.0
        %635 = vmatprep.subr.mxu0 0.0
        %636 = vmatpush1.xpose.msra.mxu0 0.0
        %637 = vmatprep.subr.mxu0 0.0
        %638 = vmatpush1.xpose.msra.mxu0 0.0
        %639 = vmatprep.subr.mxu0 0.0
        %640 = vmatpush1.xpose.msra.mxu0 0.0
        %641 = vmatprep.subr.mxu0 0.0
        %642 = vmatpush1.xpose.msra.mxu0 0.0
        %643 = vmatprep.subr.mxu0 0.0
        %644 = vmatpush1.xpose.msra.mxu0 0.0
        %645 = vmatprep.subr.mxu0 0.0
        %646 = vmatpush1.xpose.msra.mxu0 0.0
        %647 = vmatprep.subr.mxu0 0.0
        %648 = vmatpush1.xpose.msra.mxu0 0.0
        %649 = vmatprep.subr.mxu0 0.0
        %650 = vmatpush1.xpose.msra.mxu0 0.0
        %651 = vmatprep.mubr.f32.mxu0 0.0
        %652 = vmatmul.mubr.f32.gmra.mrb[0].mxu0 %v583
        %v653 = vpop.f32.mrb[0].mxu0
        %v654 = vadd.f32 0.0, %v653
        %v655 = vpop.f32.mrb[0].mxu0
        %656 = vdwg.mxu0
        %658 = vrot.lane.b32.xlu0 %v575, 96
        %v659 = vpop.permute.xlu0 %658
        %v661 = vsel %vm581, %v577, 0
        %v663 = vsel %vm581, %v659, 0
        %665 = vmatprep.subr.mxu0 0.0
        %666 = vmatpush1.xpose.msra.mxu0 %v663
        %667 = vmatprep.subr.mxu0 0.0
        %668 = vmatpush1.xpose.msra.mxu0 0.0
        %669 = vmatprep.subr.mxu0 0.0
        %670 = vmatpush1.xpose.msra.mxu0 0.0
        %671 = vmatprep.subr.mxu0 0.0
        %672 = vmatpush1.xpose.msra.mxu0 0.0
        %673 = vmatprep.subr.mxu0 0.0
        %674 = vmatpush1.xpose.msra.mxu0 0.0
        %675 = vmatprep.subr.mxu0 0.0
        %676 = vmatpush1.xpose.msra.mxu0 0.0
        %677 = vmatprep.subr.mxu0 0.0
        %678 = vmatpush1.xpose.msra.mxu0 0.0
        %679 = vmatprep.subr.mxu0 0.0
        %680 = vmatpush1.xpose.msra.mxu0 0.0
        %681 = vmatprep.subr.mxu0 0.0
        %682 = vmatpush1.xpose.msra.mxu0 0.0
        %683 = vmatprep.subr.mxu0 0.0
        %684 = vmatpush1.xpose.msra.mxu0 0.0
        %685 = vmatprep.subr.mxu0 0.0
        %686 = vmatpush1.xpose.msra.mxu0 0.0
        %687 = vmatprep.subr.mxu0 0.0
        %688 = vmatpush1.xpose.msra.mxu0 0.0
        %689 = vmatprep.subr.mxu0 0.0
        %690 = vmatpush1.xpose.msra.mxu0 0.0
        %691 = vmatprep.subr.mxu0 0.0
        %692 = vmatpush1.xpose.msra.mxu0 0.0
        %693 = vmatprep.subr.mxu0 0.0
        %694 = vmatpush1.xpose.msra.mxu0 0.0
        %695 = vmatprep.subr.mxu0 0.0
        %696 = vmatpush1.xpose.msra.mxu0 0.0
        %697 = vmatprep.subr.mxu0 0.0
        %698 = vmatpush1.xpose.msra.mxu0 0.0
        %699 = vmatprep.subr.mxu0 0.0
        %700 = vmatpush1.xpose.msra.mxu0 0.0
        %701 = vmatprep.subr.mxu0 0.0
        %702 = vmatpush1.xpose.msra.mxu0 0.0
        %703 = vmatprep.subr.mxu0 0.0
        %704 = vmatpush1.xpose.msra.mxu0 0.0
        %705 = vmatprep.subr.mxu0 0.0
        %706 = vmatpush1.xpose.msra.mxu0 0.0
        %707 = vmatprep.subr.mxu0 0.0
        %708 = vmatpush1.xpose.msra.mxu0 0.0
        %709 = vmatprep.subr.mxu0 0.0
        %710 = vmatpush1.xpose.msra.mxu0 0.0
        %711 = vmatprep.subr.mxu0 0.0
        %712 = vmatpush1.xpose.msra.mxu0 0.0
        %713 = vmatprep.subr.mxu0 0.0
        %714 = vmatpush1.xpose.msra.mxu0 0.0
        %715 = vmatprep.subr.mxu0 0.0
        %716 = vmatpush1.xpose.msra.mxu0 0.0
        %717 = vmatprep.subr.mxu0 0.0
        %718 = vmatpush1.xpose.msra.mxu0 0.0
        %719 = vmatprep.subr.mxu0 0.0
        %720 = vmatpush1.xpose.msra.mxu0 0.0
        %721 = vmatprep.subr.mxu0 0.0
        %722 = vmatpush1.xpose.msra.mxu0 0.0
        %723 = vmatprep.subr.mxu0 0.0
        %724 = vmatpush1.xpose.msra.mxu0 0.0
        %725 = vmatprep.subr.mxu0 0.0
        %726 = vmatpush1.xpose.msra.mxu0 0.0
        %727 = vmatprep.subr.mxu0 0.0
        %728 = vmatpush1.xpose.msra.mxu0 0.0
        %729 = vmatprep.mubr.f32.mxu0 0.0
        %730 = vmatmul.mubr.f32.gmra.mrb[0].mxu0 %v661
        %v731 = vpop.f32.mrb[0].mxu0
        %v732 = vadd.f32 0.0, %v731
        %v733 = vpop.f32.mrb[0].mxu0
        %734 = vdwg.mxu0
        %v735 = vsel %vm581, %v654, -inf
        %736 = vmax.xlane.f32.xlu0 %v735
        %v737 = vpop.xlane.xlu0 %736
        %v738 = vsel %vm581, %v732, -inf
        %739 = vmax.xlane.f32.xlu0 %v738
        %v740 = vpop.xlane.xlu0 %739
        %v741 = vsub.f32 %v654, %v737
        %v742 = vsub.f32 %v732, %v740
        %v743 = vmul.f32 %v741, 1.442695
        %v744 = vpow.pop %v743
        %v745 = vmul.f32 %v742, 1.442695
        %v746 = vpow.pop %v745
        %v747 = vsel %vm581, %v744, 0.0
        %748 = vadd.xlane.f32.xlu0 %v747
        %v749 = vpop.xlane.xlu0 %748
        %v750 = vsel %vm581, %v746, 0.0
        %751 = vadd.xlane.f32.xlu0 %v750
        %v752 = vpop.xlane.xlu0 %751
        %v753 = vrcp.pop %v749
        %v754 = vmul.f32 %v744, %v753
        %v755 = vrcp.pop %v752
        %v756 = vmul.f32 %v746, %v755
        %757 = vrot.lane.b32.xlu0 %v574, 64
        %v758 = vpop.permute.xlu0 %757
        %v761 = vsel %vm581, %v754, 0
        %763 = vmatprep.subr.mxu0 0.0
        %764 = vmatpush1.msra.mxu0 %v758
        %765 = vmatprep.subr.mxu0 0.0
        %766 = vmatpush1.msra.mxu0 0.0
        %767 = vmatprep.subr.mxu0 0.0
        %768 = vmatpush1.msra.mxu0 0.0
        %769 = vmatprep.subr.mxu0 0.0
        %770 = vmatpush1.msra.mxu0 0.0
        %771 = vmatprep.subr.mxu0 0.0
        %772 = vmatpush1.msra.mxu0 0.0
        %773 = vmatprep.subr.mxu0 0.0
        %774 = vmatpush1.msra.mxu0 0.0
        %775 = vmatprep.subr.mxu0 0.0
        %776 = vmatpush1.msra.mxu0 0.0
        %777 = vmatprep.subr.mxu0 0.0
        %778 = vmatpush1.msra.mxu0 0.0
        %779 = vmatprep.subr.mxu0 0.0
        %780 = vmatpush1.msra.mxu0 0.0
        %781 = vmatprep.subr.mxu0 0.0
        %782 = vmatpush1.msra.mxu0 0.0
        %783 = vmatprep.subr.mxu0 0.0
        %784 = vmatpush1.msra.mxu0 0.0
        %785 = vmatprep.subr.mxu0 0.0
        %786 = vmatpush1.msra.mxu0 0.0
        %787 = vmatprep.subr.mxu0 0.0
        %788 = vmatpush1.msra.mxu0 0.0
        %789 = vmatprep.subr.mxu0 0.0
        %790 = vmatpush1.msra.mxu0 0.0
        %791 = vmatprep.subr.mxu0 0.0
        %792 = vmatpush1.msra.mxu0 0.0
        %793 = vmatprep.subr.mxu0 0.0
        %794 = vmatpush1.msra.mxu0 0.0
        %795 = vmatprep.subr.mxu0 0.0
        %796 = vmatpush1.msra.mxu0 0.0
        %797 = vmatprep.subr.mxu0 0.0
        %798 = vmatpush1.msra.mxu0 0.0
        %799 = vmatprep.subr.mxu0 0.0
        %800 = vmatpush1.msra.mxu0 0.0
        %801 = vmatprep.subr.mxu0 0.0
        %802 = vmatpush1.msra.mxu0 0.0
        %803 = vmatprep.subr.mxu0 0.0
        %804 = vmatpush1.msra.mxu0 0.0
        %805 = vmatprep.subr.mxu0 0.0
        %806 = vmatpush1.msra.mxu0 0.0
        %807 = vmatprep.subr.mxu0 0.0
        %808 = vmatpush1.msra.mxu0 0.0
        %809 = vmatprep.subr.mxu0 0.0
        %810 = vmatpush1.msra.mxu0 0.0
        %811 = vmatprep.subr.mxu0 0.0
        %812 = vmatpush1.msra.mxu0 0.0
        %813 = vmatprep.subr.mxu0 0.0
        %814 = vmatpush1.msra.mxu0 0.0
        %815 = vmatprep.subr.mxu0 0.0
        %816 = vmatpush1.msra.mxu0 0.0
        %817 = vmatprep.subr.mxu0 0.0
        %818 = vmatpush1.msra.mxu0 0.0
        %819 = vmatprep.subr.mxu0 0.0
        %820 = vmatpush1.msra.mxu0 0.0
        %821 = vmatprep.subr.mxu0 0.0
        %822 = vmatpush1.msra.mxu0 0.0
        %823 = vmatprep.subr.mxu0 0.0
        %824 = vmatpush1.msra.mxu0 0.0
        %825 = vmatprep.subr.mxu0 0.0
        %826 = vmatpush1.msra.mxu0 0.0
        %827 = vmatprep.mubr.f32.mxu0 0.0
        %828 = vmatmul.mubr.f32.gmra.mrb[0].mxu0 %v761
        %v829 = vpop.f32.mrb[0].mxu0
        %v830 = vadd.f32 0.0, %v829
        %v831 = vpop.f32.mrb[0].mxu0
        %832 = vdwg.mxu0
        %833 = vrot.lane.b32.xlu0 %v575, 64
        %v834 = vpop.permute.xlu0 %833
        %v837 = vsel %vm581, %v756, 0
        %839 = vmatprep.subr.mxu0 0.0
        %840 = vmatpush1.msra.mxu0 %v834
        %841 = vmatprep.subr.mxu0 0.0
        %842 = vmatpush1.msra.mxu0 0.0
        %843 = vmatprep.subr.mxu0 0.0
        %844 = vmatpush1.msra.mxu0 0.0
        %845 = vmatprep.subr.mxu0 0.0
        %846 = vmatpush1.msra.mxu0 0.0
        %847 = vmatprep.subr.mxu0 0.0
        %848 = vmatpush1.msra.mxu0 0.0
        %849 = vmatprep.subr.mxu0 0.0
        %850 = vmatpush1.msra.mxu0 0.0
        %851 = vmatprep.subr.mxu0 0.0
        %852 = vmatpush1.msra.mxu0 0.0
        %853 = vmatprep.subr.mxu0 0.0
        %854 = vmatpush1.msra.mxu0 0.0
        %855 = vmatprep.subr.mxu0 0.0
        %856 = vmatpush1.msra.mxu0 0.0
        %857 = vmatprep.subr.mxu0 0.0
        %858 = vmatpush1.msra.mxu0 0.0
        %859 = vmatprep.subr.mxu0 0.0
        %860 = vmatpush1.msra.mxu0 0.0
        %861 = vmatprep.subr.mxu0 0.0
        %862 = vmatpush1.msra.mxu0 0.0
        %863 = vmatprep.subr.mxu0 0.0
        %864 = vmatpush1.msra.mxu0 0.0
        %865 = vmatprep.subr.mxu0 0.0
        %866 = vmatpush1.msra.mxu0 0.0
        %867 = vmatprep.subr.mxu0 0.0
        %868 = vmatpush1.msra.mxu0 0.0
        %869 = vmatprep.subr.mxu0 0.0
        %870 = vmatpush1.msra.mxu0 0.0
        %871 = vmatprep.subr.mxu0 0.0
        %872 = vmatpush1.msra.mxu0 0.0
        %873 = vmatprep.subr.mxu0 0.0
        %874 = vmatpush1.msra.mxu0 0.0
        %875 = vmatprep.subr.mxu0 0.0
        %876 = vmatpush1.msra.mxu0 0.0
        %877 = vmatprep.subr.mxu0 0.0
        %878 = vmatpush1.msra.mxu0 0.0
        %879 = vmatprep.subr.mxu0 0.0
        %880 = vmatpush1.msra.mxu0 0.0
        %881 = vmatprep.subr.mxu0 0.0
        %882 = vmatpush1.msra.mxu0 0.0
        %883 = vmatprep.subr.mxu0 0.0
        %884 = vmatpush1.msra.mxu0 0.0
        %885 = vmatprep.subr.mxu0 0.0
        %886 = vmatpush1.msra.mxu0 0.0
        %887 = vmatprep.subr.mxu0 0.0
        %888 = vmatpush1.msra.mxu0 0.0
        %889 = vmatprep.subr.mxu0 0.0
        %890 = vmatpush1.msra.mxu0 0.0
        %891 = vmatprep.subr.mxu0 0.0
        %892 = vmatpush1.msra.mxu0 0.0
        %893 = vmatprep.subr.mxu0 0.0
        %894 = vmatpush1.msra.mxu0 0.0
        %895 = vmatprep.subr.mxu0 0.0
        %896 = vmatpush1.msra.mxu0 0.0
        %897 = vmatprep.subr.mxu0 0.0
        %898 = vmatpush1.msra.mxu0 0.0
        %899 = vmatprep.subr.mxu0 0.0
        %900 = vmatpush1.msra.mxu0 0.0
        %901 = vmatprep.subr.mxu0 0.0
        %902 = vmatpush1.msra.mxu0 0.0
        %903 = vmatprep.mubr.f32.mxu0 0.0
        %904 = vmatmul.mubr.f32.gmra.mrb[0].mxu0 %v837
        %v905 = vpop.f32.mrb[0].mxu0
        %v906 = vadd.f32 0.0, %v905
        %v907 = vpop.f32.mrb[0].mxu0
        %908 = vdwg.mxu0
        %909 = vrot.lane.b32.xlu0 %v576, 120
        %v910 = vpop.permute.xlu0 %909
        %911 = vrot.lane.b32.xlu0 %v574, 88
        %v912 = vpop.permute.xlu0 %911
        %v913 = vsel %vm581, %v910, 0
        %v915 = vsel %vm581, %v912, 0
        %917 = vmatprep.subr.mxu0 0.0
        %918 = vmatpush1.xpose.msra.mxu0 %v915
        %919 = vmatprep.subr.mxu0 0.0
        %920 = vmatpush1.xpose.msra.mxu0 0.0
        %921 = vmatprep.subr.mxu0 0.0
        %922 = vmatpush1.xpose.msra.mxu0 0.0
        %923 = vmatprep.subr.mxu0 0.0
        %924 = vmatpush1.xpose.msra.mxu0 0.0
        %925 = vmatprep.subr.mxu0 0.0
        %926 = vmatpush1.xpose.msra.mxu0 0.0
        %927 = vmatprep.subr.mxu0 0.0
        %928 = vmatpush1.xpose.msra.mxu0 0.0
        %929 = vmatprep.subr.mxu0 0.0
        %930 = vmatpush1.xpose.msra.mxu0 0.0
        %931 = vmatprep.subr.mxu0 0.0
        %932 = vmatpush1.xpose.msra.mxu0 0.0
        %933 = vmatprep.subr.mxu0 0.0
        %934 = vmatpush1.xpose.msra.mxu0 0.0
        %935 = vmatprep.subr.mxu0 0.0
        %936 = vmatpush1.xpose.msra.mxu0 0.0
        %937 = vmatprep.subr.mxu0 0.0
        %938 = vmatpush1.xpose.msra.mxu0 0.0
        %939 = vmatprep.subr.mxu0 0.0
        %940 = vmatpush1.xpose.msra.mxu0 0.0
        %941 = vmatprep.subr.mxu0 0.0
        %942 = vmatpush1.xpose.msra.mxu0 0.0
        %943 = vmatprep.subr.mxu0 0.0
        %944 = vmatpush1.xpose.msra.mxu0 0.0
        %945 = vmatprep.subr.mxu0 0.0
        %946 = vmatpush1.xpose.msra.mxu0 0.0
        %947 = vmatprep.subr.mxu0 0.0
        %948 = vmatpush1.xpose.msra.mxu0 0.0
        %949 = vmatprep.subr.mxu0 0.0
        %950 = vmatpush1.xpose.msra.mxu0 0.0
        %951 = vmatprep.subr.mxu0 0.0
        %952 = vmatpush1.xpose.msra.mxu0 0.0
        %953 = vmatprep.subr.mxu0 0.0
        %954 = vmatpush1.xpose.msra.mxu0 0.0
        %955 = vmatprep.subr.mxu0 0.0
        %956 = vmatpush1.xpose.msra.mxu0 0.0
        %957 = vmatprep.subr.mxu0 0.0
        %958 = vmatpush1.xpose.msra.mxu0 0.0
        %959 = vmatprep.subr.mxu0 0.0
        %960 = vmatpush1.xpose.msra.mxu0 0.0
        %961 = vmatprep.subr.mxu0 0.0
        %962 = vmatpush1.xpose.msra.mxu0 0.0
        %963 = vmatprep.subr.mxu0 0.0
        %964 = vmatpush1.xpose.msra.mxu0 0.0
        %965 = vmatprep.subr.mxu0 0.0
        %966 = vmatpush1.xpose.msra.mxu0 0.0
        %967 = vmatprep.subr.mxu0 0.0
        %968 = vmatpush1.xpose.msra.mxu0 0.0
        %969 = vmatprep.subr.mxu0 0.0
        %970 = vmatpush1.xpose.msra.mxu0 0.0
        %971 = vmatprep.subr.mxu0 0.0
        %972 = vmatpush1.xpose.msra.mxu0 0.0
        %973 = vmatprep.subr.mxu0 0.0
        %974 = vmatpush1.xpose.msra.mxu0 0.0
        %975 = vmatprep.subr.mxu0 0.0
        %976 = vmatpush1.xpose.msra.mxu0 0.0
        %977 = vmatprep.subr.mxu0 0.0
        %978 = vmatpush1.xpose.msra.mxu0 0.0
        %979 = vmatprep.subr.mxu0 0.0
        %980 = vmatpush1.xpose.msra.mxu0 0.0
        %981 = vmatprep.mubr.f32.mxu0 0.0
        %982 = vmatmul.mubr.f32.gmra.mrb[0].mxu0 %v913
        %v983 = vpop.f32.mrb[0].mxu0
        %v984 = vadd.f32 0.0, %v983
        %v985 = vpop.f32.mrb[0].mxu0
        %986 = vdwg.mxu0
        %987 = vrot.lane.b32.xlu0 %v577, 120
        %v988 = vpop.permute.xlu0 %987
        %989 = vrot.lane.b32.xlu0 %v575, 88
        %v990 = vpop.permute.xlu0 %989
        %v991 = vsel %vm581, %v988, 0
        %v993 = vsel %vm581, %v990, 0
        %995 = vmatprep.subr.mxu0 0.0
        %996 = vmatpush1.xpose.msra.mxu0 %v993
        %997 = vmatprep.subr.mxu0 0.0
        %998 = vmatpush1.xpose.msra.mxu0 0.0
        %999 = vmatprep.subr.mxu0 0.0
        %1000 = vmatpush1.xpose.msra.mxu0 0.0
        %1001 = vmatprep.subr.mxu0 0.0
        %1002 = vmatpush1.xpose.msra.mxu0 0.0
        %1003 = vmatprep.subr.mxu0 0.0
        %1004 = vmatpush1.xpose.msra.mxu0 0.0
        %1005 = vmatprep.subr.mxu0 0.0
        %1006 = vmatpush1.xpose.msra.mxu0 0.0
        %1007 = vmatprep.subr.mxu0 0.0
        %1008 = vmatpush1.xpose.msra.mxu0 0.0
        %1009 = vmatprep.subr.mxu0 0.0
        %1010 = vmatpush1.xpose.msra.mxu0 0.0
        %1011 = vmatprep.subr.mxu0 0.0
        %1012 = vmatpush1.xpose.msra.mxu0 0.0
        %1013 = vmatprep.subr.mxu0 0.0
        %1014 = vmatpush1.xpose.msra.mxu0 0.0
        %1015 = vmatprep.subr.mxu0 0.0
        %1016 = vmatpush1.xpose.msra.mxu0 0.0
        %1017 = vmatprep.subr.mxu0 0.0
        %1018 = vmatpush1.xpose.msra.mxu0 0.0
        %1019 = vmatprep.subr.mxu0 0.0
        %1020 = vmatpush1.xpose.msra.mxu0 0.0
        %1021 = vmatprep.subr.mxu0 0.0
        %1022 = vmatpush1.xpose.msra.mxu0 0.0
        %1023 = vmatprep.subr.mxu0 0.0
        %1024 = vmatpush1.xpose.msra.mxu0 0.0
        %1025 = vmatprep.subr.mxu0 0.0
        %1026 = vmatpush1.xpose.msra.mxu0 0.0
        %1027 = vmatprep.subr.mxu0 0.0
        %1028 = vmatpush1.xpose.msra.mxu0 0.0
        %1029 = vmatprep.subr.mxu0 0.0
        %1030 = vmatpush1.xpose.msra.mxu0 0.0
        %1031 = vmatprep.subr.mxu0 0.0
        %1032 = vmatpush1.xpose.msra.mxu0 0.0
        %1033 = vmatprep.subr.mxu0 0.0
        %1034 = vmatpush1.xpose.msra.mxu0 0.0
        %1035 = vmatprep.subr.mxu0 0.0
        %1036 = vmatpush1.xpose.msra.mxu0 0.0
        %1037 = vmatprep.subr.mxu0 0.0
        %1038 = vmatpush1.xpose.msra.mxu0 0.0
        %1039 = vmatprep.subr.mxu0 0.0
        %1040 = vmatpush1.xpose.msra.mxu0 0.0
        %1041 = vmatprep.subr.mxu0 0.0
        %1042 = vmatpush1.xpose.msra.mxu0 0.0
        %1043 = vmatprep.subr.mxu0 0.0
        %1044 = vmatpush1.xpose.msra.mxu0 0.0
        %1045 = vmatprep.subr.mxu0 0.0
        %1046 = vmatpush1.xpose.msra.mxu0 0.0
        %1047 = vmatprep.subr.mxu0 0.0
        %1048 = vmatpush1.xpose.msra.mxu0 0.0
        %1049 = vmatprep.subr.mxu0 0.0
        %1050 = vmatpush1.xpose.msra.mxu0 0.0
        %1051 = vmatprep.subr.mxu0 0.0
        %1052 = vmatpush1.xpose.msra.mxu0 0.0
        %1053 = vmatprep.subr.mxu0 0.0
        %1054 = vmatpush1.xpose.msra.mxu0 0.0
        %1055 = vmatprep.subr.mxu0 0.0
        %1056 = vmatpush1.xpose.msra.mxu0 0.0
        %1057 = vmatprep.subr.mxu0 0.0
        %1058 = vmatpush1.xpose.msra.mxu0 0.0
        %1059 = vmatprep.mubr.f32.mxu0 0.0
        %1060 = vmatmul.mubr.f32.gmra.mrb[0].mxu0 %v991
        %v1061 = vpop.f32.mrb[0].mxu0
        %v1062 = vadd.f32 0.0, %v1061
        %v1063 = vpop.f32.mrb[0].mxu0
        %1064 = vdwg.mxu0
        %v1065 = vsel %vm581, %v984, -inf
        %1066 = vmax.xlane.f32.xlu0 %v1065
        %v1067 = vpop.xlane.xlu0 %1066
        %v1068 = vsel %vm581, %v1062, -inf
        %1069 = vmax.xlane.f32.xlu0 %v1068
        %v1070 = vpop.xlane.xlu0 %1069
        %v1071 = vsub.f32 %v984, %v1067
        %v1072 = vsub.f32 %v1062, %v1070
        %v1073 = vmul.f32 %v1071, 1.442695
        %v1074 = vpow.pop %v1073
        %v1075 = vmul.f32 %v1072, 1.442695
        %v1076 = vpow.pop %v1075
        %v1077 = vsel %vm581, %v1074, 0.0
        %1078 = vadd.xlane.f32.xlu0 %v1077
        %v1079 = vpop.xlane.xlu0 %1078
        %v1080 = vsel %vm581, %v1076, 0.0
        %1081 = vadd.xlane.f32.xlu0 %v1080
        %v1082 = vpop.xlane.xlu0 %1081
        %v1083 = vrcp.pop %v1079
        %v1084 = vmul.f32 %v1074, %v1083
        %v1085 = vrcp.pop %v1082
        %v1086 = vmul.f32 %v1076, %v1085
        %1087 = vrot.lane.b32.xlu0 %v574, 56
        %v1088 = vpop.permute.xlu0 %1087
        %v1091 = vsel %vm581, %v1084, 0
        %1093 = vmatprep.subr.mxu0 0.0
        %1094 = vmatpush1.msra.mxu0 %v1088
        %1095 = vmatprep.subr.mxu0 0.0
        %1096 = vmatpush1.msra.mxu0 0.0
        %1097 = vmatprep.subr.mxu0 0.0
        %1098 = vmatpush1.msra.mxu0 0.0
        %1099 = vmatprep.subr.mxu0 0.0
        %1100 = vmatpush1.msra.mxu0 0.0
        %1101 = vmatprep.subr.mxu0 0.0
        %1102 = vmatpush1.msra.mxu0 0.0
        %1103 = vmatprep.subr.mxu0 0.0
        %1104 = vmatpush1.msra.mxu0 0.0
        %1105 = vmatprep.subr.mxu0 0.0
        %1106 = vmatpush1.msra.mxu0 0.0
        %1107 = vmatprep.subr.mxu0 0.0
        %1108 = vmatpush1.msra.mxu0 0.0
        %1109 = vmatprep.subr.mxu0 0.0
        %1110 = vmatpush1.msra.mxu0 0.0
        %1111 = vmatprep.subr.mxu0 0.0
        %1112 = vmatpush1.msra.mxu0 0.0
        %1113 = vmatprep.subr.mxu0 0.0
        %1114 = vmatpush1.msra.mxu0 0.0
        %1115 = vmatprep.subr.mxu0 0.0
        %1116 = vmatpush1.msra.mxu0 0.0
        %1117 = vmatprep.subr.mxu0 0.0
        %1118 = vmatpush1.msra.mxu0 0.0
        %1119 = vmatprep.subr.mxu0 0.0
        %1120 = vmatpush1.msra.mxu0 0.0
        %1121 = vmatprep.subr.mxu0 0.0
        %1122 = vmatpush1.msra.mxu0 0.0
        %1123 = vmatprep.subr.mxu0 0.0
        %1124 = vmatpush1.msra.mxu0 0.0
        %1125 = vmatprep.subr.mxu0 0.0
        %1126 = vmatpush1.msra.mxu0 0.0
        %1127 = vmatprep.subr.mxu0 0.0
        %1128 = vmatpush1.msra.mxu0 0.0
        %1129 = vmatprep.subr.mxu0 0.0
        %1130 = vmatpush1.msra.mxu0 0.0
        %1131 = vmatprep.subr.mxu0 0.0
        %1132 = vmatpush1.msra.mxu0 0.0
        %1133 = vmatprep.subr.mxu0 0.0
        %1134 = vmatpush1.msra.mxu0 0.0
        %1135 = vmatprep.subr.mxu0 0.0
        %1136 = vmatpush1.msra.mxu0 0.0
        %1137 = vmatprep.subr.mxu0 0.0
        %1138 = vmatpush1.msra.mxu0 0.0
        %1139 = vmatprep.subr.mxu0 0.0
        %1140 = vmatpush1.msra.mxu0 0.0
        %1141 = vmatprep.subr.mxu0 0.0
        %1142 = vmatpush1.msra.mxu0 0.0
        %1143 = vmatprep.subr.mxu0 0.0
        %1144 = vmatpush1.msra.mxu0 0.0
        %1145 = vmatprep.subr.mxu0 0.0
        %1146 = vmatpush1.msra.mxu0 0.0
        %1147 = vmatprep.subr.mxu0 0.0
        %1148 = vmatpush1.msra.mxu0 0.0
        %1149 = vmatprep.subr.mxu0 0.0
        %1150 = vmatpush1.msra.mxu0 0.0
        %1151 = vmatprep.subr.mxu0 0.0
        %1152 = vmatpush1.msra.mxu0 0.0
        %1153 = vmatprep.subr.mxu0 0.0
        %1154 = vmatpush1.msra.mxu0 0.0
        %1155 = vmatprep.subr.mxu0 0.0
        %1156 = vmatpush1.msra.mxu0 0.0
        %1157 = vmatprep.mubr.f32.mxu0 0.0
        %1158 = vmatmul.mubr.f32.gmra.mrb[0].mxu0 %v1091
        %v1159 = vpop.f32.mrb[0].mxu0
        %v1160 = vadd.f32 0.0, %v1159
        %v1161 = vpop.f32.mrb[0].mxu0
        %1162 = vdwg.mxu0
        %1163 = vrot.lane.b32.xlu0 %v575, 56
        %v1164 = vpop.permute.xlu0 %1163
        %v1167 = vsel %vm581, %v1086, 0
        %1169 = vmatprep.subr.mxu0 0.0
        %1170 = vmatpush1.msra.mxu0 %v1164
        %1171 = vmatprep.subr.mxu0 0.0
        %1172 = vmatpush1.msra.mxu0 0.0
        %1173 = vmatprep.subr.mxu0 0.0
        %1174 = vmatpush1.msra.mxu0 0.0
        %1175 = vmatprep.subr.mxu0 0.0
        %1176 = vmatpush1.msra.mxu0 0.0
        %1177 = vmatprep.subr.mxu0 0.0
        %1178 = vmatpush1.msra.mxu0 0.0
        %1179 = vmatprep.subr.mxu0 0.0
        %1180 = vmatpush1.msra.mxu0 0.0
        %1181 = vmatprep.subr.mxu0 0.0
        %1182 = vmatpush1.msra.mxu0 0.0
        %1183 = vmatprep.subr.mxu0 0.0
        %1184 = vmatpush1.msra.mxu0 0.0
        %1185 = vmatprep.subr.mxu0 0.0
        %1186 = vmatpush1.msra.mxu0 0.0
        %1187 = vmatprep.subr.mxu0 0.0
        %1188 = vmatpush1.msra.mxu0 0.0
        %1189 = vmatprep.subr.mxu0 0.0
        %1190 = vmatpush1.msra.mxu0 0.0
        %1191 = vmatprep.subr.mxu0 0.0
        %1192 = vmatpush1.msra.mxu0 0.0
        %1193 = vmatprep.subr.mxu0 0.0
        %1194 = vmatpush1.msra.mxu0 0.0
        %1195 = vmatprep.subr.mxu0 0.0
        %1196 = vmatpush1.msra.mxu0 0.0
        %1197 = vmatprep.subr.mxu0 0.0
        %1198 = vmatpush1.msra.mxu0 0.0
        %1199 = vmatprep.subr.mxu0 0.0
        %1200 = vmatpush1.msra.mxu0 0.0
        %1201 = vmatprep.subr.mxu0 0.0
        %1202 = vmatpush1.msra.mxu0 0.0
        %1203 = vmatprep.subr.mxu0 0.0
        %1204 = vmatpush1.msra.mxu0 0.0
        %1205 = vmatprep.subr.mxu0 0.0
        %1206 = vmatpush1.msra.mxu0 0.0
        %1207 = vmatprep.subr.mxu0 0.0
        %1208 = vmatpush1.msra.mxu0 0.0
        %1209 = vmatprep.subr.mxu0 0.0
        %1210 = vmatpush1.msra.mxu0 0.0
        %1211 = vmatprep.subr.mxu0 0.0
        %1212 = vmatpush1.msra.mxu0 0.0
        %1213 = vmatprep.subr.mxu0 0.0
        %1214 = vmatpush1.msra.mxu0 0.0
        %1215 = vmatprep.subr.mxu0 0.0
        %1216 = vmatpush1.msra.mxu0 0.0
        %1217 = vmatprep.subr.mxu0 0.0
        %1218 = vmatpush1.msra.mxu0 0.0
        %1219 = vmatprep.subr.mxu0 0.0
        %1220 = vmatpush1.msra.mxu0 0.0
        %1221 = vmatprep.subr.mxu0 0.0
        %1222 = vmatpush1.msra.mxu0 0.0
        %1223 = vmatprep.subr.mxu0 0.0
        %1224 = vmatpush1.msra.mxu0 0.0
        %1225 = vmatprep.subr.mxu0 0.0
        %1226 = vmatpush1.msra.mxu0 0.0
        %1227 = vmatprep.subr.mxu0 0.0
        %1228 = vmatpush1.msra.mxu0 0.0
        %1229 = vmatprep.subr.mxu0 0.0
        %1230 = vmatpush1.msra.mxu0 0.0
        %1231 = vmatprep.subr.mxu0 0.0
        %1232 = vmatpush1.msra.mxu0 0.0
        %1233 = vmatprep.mubr.f32.mxu0 0.0
        %1234 = vmatmul.mubr.f32.gmra.mrb[0].mxu0 %v1167
        %v1235 = vpop.f32.mrb[0].mxu0
        %v1236 = vadd.f32 0.0, %v1235
        %v1237 = vpop.f32.mrb[0].mxu0
        %1238 = vdwg.mxu0
        %1239 = vrot.lane.b32.xlu0 %v576, 112
        %v1240 = vpop.permute.xlu0 %1239
        %1241 = vrot.lane.b32.xlu0 %v574, 80
        %v1242 = vpop.permute.xlu0 %1241
        %v1243 = vsel %vm581, %v1240, 0
        %v1245 = vsel %vm581, %v1242, 0
        %1247 = vmatprep.subr.mxu0 0.0
        %1248 = vmatpush1.xpose.msra.mxu0 %v1245
        %1249 = vmatprep.subr.mxu0 0.0
        %1250 = vmatpush1.xpose.msra.mxu0 0.0
        %1251 = vmatprep.subr.mxu0 0.0
        %1252 = vmatpush1.xpose.msra.mxu0 0.0
        %1253 = vmatprep.subr.mxu0 0.0
        %1254 = vmatpush1.xpose.msra.mxu0 0.0
        %1255 = vmatprep.subr.mxu0 0.0
        %1256 = vmatpush1.xpose.msra.mxu0 0.0
        %1257 = vmatprep.subr.mxu0 0.0
        %1258 = vmatpush1.xpose.msra.mxu0 0.0
        %1259 = vmatprep.subr.mxu0 0.0
        %1260 = vmatpush1.xpose.msra.mxu0 0.0
        %1261 = vmatprep.subr.mxu0 0.0
        %1262 = vmatpush1.xpose.msra.mxu0 0.0
        %1263 = vmatprep.subr.mxu0 0.0
        %1264 = vmatpush1.xpose.msra.mxu0 0.0
        %1265 = vmatprep.subr.mxu0 0.0
        %1266 = vmatpush1.xpose.msra.mxu0 0.0
        %1267 = vmatprep.subr.mxu0 0.0
        %1268 = vmatpush1.xpose.msra.mxu0 0.0
        %1269 = vmatprep.subr.mxu0 0.0
        %1270 = vmatpush1.xpose.msra.mxu0 0.0
        %1271 = vmatprep.subr.mxu0 0.0
        %1272 = vmatpush1.xpose.msra.mxu0 0.0
        %1273 = vmatprep.subr.mxu0 0.0
        %1274 = vmatpush1.xpose.msra.mxu0 0.0
        %1275 = vmatprep.subr.mxu0 0.0
        %1276 = vmatpush1.xpose.msra.mxu0 0.0
        %1277 = vmatprep.subr.mxu0 0.0
        %1278 = vmatpush1.xpose.msra.mxu0 0.0
        %1279 = vmatprep.subr.mxu0 0.0
        %1280 = vmatpush1.xpose.msra.mxu0 0.0
        %1281 = vmatprep.subr.mxu0 0.0
        %1282 = vmatpush1.xpose.msra.mxu0 0.0
        %1283 = vmatprep.subr.mxu0 0.0
        %1284 = vmatpush1.xpose.msra.mxu0 0.0
        %1285 = vmatprep.subr.mxu0 0.0
        %1286 = vmatpush1.xpose.msra.mxu0 0.0
        %1287 = vmatprep.subr.mxu0 0.0
        %1288 = vmatpush1.xpose.msra.mxu0 0.0
        %1289 = vmatprep.subr.mxu0 0.0
        %1290 = vmatpush1.xpose.msra.mxu0 0.0
        %1291 = vmatprep.subr.mxu0 0.0
        %1292 = vmatpush1.xpose.msra.mxu0 0.0
        %1293 = vmatprep.subr.mxu0 0.0
        %1294 = vmatpush1.xpose.msra.mxu0 0.0
        %1295 = vmatprep.subr.mxu0 0.0
        %1296 = vmatpush1.xpose.msra.mxu0 0.0
        %1297 = vmatprep.subr.mxu0 0.0
        %1298 = vmatpush1.xpose.msra.mxu0 0.0
        %1299 = vmatprep.subr.mxu0 0.0
        %1300 = vmatpush1.xpose.msra.mxu0 0.0
        %1301 = vmatprep.subr.mxu0 0.0
        %1302 = vmatpush1.xpose.msra.mxu0 0.0
        %1303 = vmatprep.subr.mxu0 0.0
        %1304 = vmatpush1.xpose.msra.mxu0 0.0
        %1305 = vmatprep.subr.mxu0 0.0
        %1306 = vmatpush1.xpose.msra.mxu0 0.0
        %1307 = vmatprep.subr.mxu0 0.0
        %1308 = vmatpush1.xpose.msra.mxu0 0.0
        %1309 = vmatprep.subr.mxu0 0.0
        %1310 = vmatpush1.xpose.msra.mxu0 0.0
        %1311 = vmatprep.mubr.f32.mxu0 0.0
        %1312 = vmatmul.mubr.f32.gmra.mrb[0].mxu0 %v1243
        %v1313 = vpop.f32.mrb[0].mxu0
        %v1314 = vadd.f32 0.0, %v1313
        %v1315 = vpop.f32.mrb[0].mxu0
        %1316 = vdwg.mxu0
        %1317 = vrot.lane.b32.xlu0 %v577, 112
        %v1318 = vpop.permute.xlu0 %1317
        %1319 = vrot.lane.b32.xlu0 %v575, 80
        %v1320 = vpop.permute.xlu0 %1319
        %v1321 = vsel %vm581, %v1318, 0
        %v1323 = vsel %vm581, %v1320, 0
        %1325 = vmatprep.subr.mxu0 0.0
        %1326 = vmatpush1.xpose.msra.mxu0 %v1323
        %1327 = vmatprep.subr.mxu0 0.0
        %1328 = vmatpush1.xpose.msra.mxu0 0.0
        %1329 = vmatprep.subr.mxu0 0.0
        %1330 = vmatpush1.xpose.msra.mxu0 0.0
        %1331 = vmatprep.subr.mxu0 0.0
        %1332 = vmatpush1.xpose.msra.mxu0 0.0
        %1333 = vmatprep.subr.mxu0 0.0
        %1334 = vmatpush1.xpose.msra.mxu0 0.0
        %1335 = vmatprep.subr.mxu0 0.0
        %1336 = vmatpush1.xpose.msra.mxu0 0.0
        %1337 = vmatprep.subr.mxu0 0.0
        %1338 = vmatpush1.xpose.msra.mxu0 0.0
        %1339 = vmatprep.subr.mxu0 0.0
        %1340 = vmatpush1.xpose.msra.mxu0 0.0
        %1341 = vmatprep.subr.mxu0 0.0
        %1342 = vmatpush1.xpose.msra.mxu0 0.0
        %1343 = vmatprep.subr.mxu0 0.0
        %1344 = vmatpush1.xpose.msra.mxu0 0.0
        %1345 = vmatprep.subr.mxu0 0.0
        %1346 = vmatpush1.xpose.msra.mxu0 0.0
        %1347 = vmatprep.subr.mxu0 0.0
        %1348 = vmatpush1.xpose.msra.mxu0 0.0
        %1349 = vmatprep.subr.mxu0 0.0
        %1350 = vmatpush1.xpose.msra.mxu0 0.0
        %1351 = vmatprep.subr.mxu0 0.0
        %1352 = vmatpush1.xpose.msra.mxu0 0.0
        %1353 = vmatprep.subr.mxu0 0.0
        %1354 = vmatpush1.xpose.msra.mxu0 0.0
        %1355 = vmatprep.subr.mxu0 0.0
        %1356 = vmatpush1.xpose.msra.mxu0 0.0
        %1357 = vmatprep.subr.mxu0 0.0
        %1358 = vmatpush1.xpose.msra.mxu0 0.0
        %1359 = vmatprep.subr.mxu0 0.0
        %1360 = vmatpush1.xpose.msra.mxu0 0.0
        %1361 = vmatprep.subr.mxu0 0.0
        %1362 = vmatpush1.xpose.msra.mxu0 0.0
        %1363 = vmatprep.subr.mxu0 0.0
        %1364 = vmatpush1.xpose.msra.mxu0 0.0
        %1365 = vmatprep.subr.mxu0 0.0
        %1366 = vmatpush1.xpose.msra.mxu0 0.0
        %1367 = vmatprep.subr.mxu0 0.0
        %1368 = vmatpush1.xpose.msra.mxu0 0.0
        %1369 = vmatprep.subr.mxu0 0.0
        %1370 = vmatpush1.xpose.msra.mxu0 0.0
        %1371 = vmatprep.subr.mxu0 0.0
        %1372 = vmatpush1.xpose.msra.mxu0 0.0
        %1373 = vmatprep.subr.mxu0 0.0
        %1374 = vmatpush1.xpose.msra.mxu0 0.0
        %1375 = vmatprep.subr.mxu0 0.0
        %1376 = vmatpush1.xpose.msra.mxu0 0.0
        %1377 = vmatprep.subr.mxu0 0.0
        %1378 = vmatpush1.xpose.msra.mxu0 0.0
        %1379 = vmatprep.subr.mxu0 0.0
        %1380 = vmatpush1.xpose.msra.mxu0 0.0
        %1381 = vmatprep.subr.mxu0 0.0
        %1382 = vmatpush1.xpose.msra.mxu0 0.0
        %1383 = vmatprep.subr.mxu0 0.0
        %1384 = vmatpush1.xpose.msra.mxu0 0.0
        %1385 = vmatprep.subr.mxu0 0.0
        %1386 = vmatpush1.xpose.msra.mxu0 0.0
        %1387 = vmatprep.subr.mxu0 0.0
        %1388 = vmatpush1.xpose.msra.mxu0 0.0
        %1389 = vmatprep.mubr.f32.mxu0 0.0
        %1390 = vmatmul.mubr.f32.gmra.mrb[0].mxu0 %v1321
        %v1391 = vpop.f32.mrb[0].mxu0
        %v1392 = vadd.f32 0.0, %v1391
        %v1393 = vpop.f32.mrb[0].mxu0
        %1394 = vdwg.mxu0
        %v1395 = vsel %vm581, %v1314, -inf
        %1396 = vmax.xlane.f32.xlu0 %v1395
        %v1397 = vpop.xlane.xlu0 %1396
        %v1398 = vsel %vm581, %v1392, -inf
        %1399 = vmax.xlane.f32.xlu0 %v1398
        %v1400 = vpop.xlane.xlu0 %1399
        %v1401 = vsub.f32 %v1314, %v1397
        %v1402 = vsub.f32 %v1392, %v1400
        %v1403 = vmul.f32 %v1401, 1.442695
        %v1404 = vpow.pop %v1403
        %v1405 = vmul.f32 %v1402, 1.442695
        %v1406 = vpow.pop %v1405
        %v1407 = vsel %vm581, %v1404, 0.0
        %1408 = vadd.xlane.f32.xlu0 %v1407
        %v1409 = vpop.xlane.xlu0 %1408
        %v1410 = vsel %vm581, %v1406, 0.0
        %1411 = vadd.xlane.f32.xlu0 %v1410
        %v1412 = vpop.xlane.xlu0 %1411
        %v1413 = vrcp.pop %v1409
        %v1414 = vmul.f32 %v1404, %v1413
        %v1415 = vrcp.pop %v1412
        %v1416 = vmul.f32 %v1406, %v1415
        %1417 = vrot.lane.b32.xlu0 %v574, 48
        %v1418 = vpop.permute.xlu0 %1417
        %v1421 = vsel %vm581, %v1414, 0
        %1423 = vmatprep.subr.mxu0 0.0
        %1424 = vmatpush1.msra.mxu0 %v1418
        %1425 = vmatprep.subr.mxu0 0.0
        %1426 = vmatpush1.msra.mxu0 0.0
        %1427 = vmatprep.subr.mxu0 0.0
        %1428 = vmatpush1.msra.mxu0 0.0
        %1429 = vmatprep.subr.mxu0 0.0
        %1430 = vmatpush1.msra.mxu0 0.0
        %1431 = vmatprep.subr.mxu0 0.0
        %1432 = vmatpush1.msra.mxu0 0.0
        %1433 = vmatprep.subr.mxu0 0.0
        %1434 = vmatpush1.msra.mxu0 0.0
        %1435 = vmatprep.subr.mxu0 0.0
        %1436 = vmatpush1.msra.mxu0 0.0
        %1437 = vmatprep.subr.mxu0 0.0
        %1438 = vmatpush1.msra.mxu0 0.0
        %1439 = vmatprep.subr.mxu0 0.0
        %1440 = vmatpush1.msra.mxu0 0.0
        %1441 = vmatprep.subr.mxu0 0.0
        %1442 = vmatpush1.msra.mxu0 0.0
        %1443 = vmatprep.subr.mxu0 0.0
        %1444 = vmatpush1.msra.mxu0 0.0
        %1445 = vmatprep.subr.mxu0 0.0
        %1446 = vmatpush1.msra.mxu0 0.0
        %1447 = vmatprep.subr.mxu0 0.0
        %1448 = vmatpush1.msra.mxu0 0.0
        %1449 = vmatprep.subr.mxu0 0.0
        %1450 = vmatpush1.msra.mxu0 0.0
        %1451 = vmatprep.subr.mxu0 0.0
        %1452 = vmatpush1.msra.mxu0 0.0
        %1453 = vmatprep.subr.mxu0 0.0
        %1454 = vmatpush1.msra.mxu0 0.0
        %1455 = vmatprep.subr.mxu0 0.0
        %1456 = vmatpush1.msra.mxu0 0.0
        %1457 = vmatprep.subr.mxu0 0.0
        %1458 = vmatpush1.msra.mxu0 0.0
        %1459 = vmatprep.subr.mxu0 0.0
        %1460 = vmatpush1.msra.mxu0 0.0
        %1461 = vmatprep.subr.mxu0 0.0
        %1462 = vmatpush1.msra.mxu0 0.0
        %1463 = vmatprep.subr.mxu0 0.0
        %1464 = vmatpush1.msra.mxu0 0.0
        %1465 = vmatprep.subr.mxu0 0.0
        %1466 = vmatpush1.msra.mxu0 0.0
        %1467 = vmatprep.subr.mxu0 0.0
        %1468 = vmatpush1.msra.mxu0 0.0
        %1469 = vmatprep.subr.mxu0 0.0
        %1470 = vmatpush1.msra.mxu0 0.0
        %1471 = vmatprep.subr.mxu0 0.0
        %1472 = vmatpush1.msra.mxu0 0.0
        %1473 = vmatprep.subr.mxu0 0.0
        %1474 = vmatpush1.msra.mxu0 0.0
        %1475 = vmatprep.subr.mxu0 0.0
        %1476 = vmatpush1.msra.mxu0 0.0
        %1477 = vmatprep.subr.mxu0 0.0
        %1478 = vmatpush1.msra.mxu0 0.0
        %1479 = vmatprep.subr.mxu0 0.0
        %1480 = vmatpush1.msra.mxu0 0.0
        %1481 = vmatprep.subr.mxu0 0.0
        %1482 = vmatpush1.msra.mxu0 0.0
        %1483 = vmatprep.subr.mxu0 0.0
        %1484 = vmatpush1.msra.mxu0 0.0
        %1485 = vmatprep.subr.mxu0 0.0
        %1486 = vmatpush1.msra.mxu0 0.0
        %1487 = vmatprep.mubr.f32.mxu0 0.0
        %1488 = vmatmul.mubr.f32.gmra.mrb[0].mxu0 %v1421
        %v1489 = vpop.f32.mrb[0].mxu0
        %v1490 = vadd.f32 0.0, %v1489
        %v1491 = vpop.f32.mrb[0].mxu0
        %1492 = vdwg.mxu0
        %1493 = vrot.lane.b32.xlu0 %v575, 48
        %v1494 = vpop.permute.xlu0 %1493
        %v1497 = vsel %vm581, %v1416, 0
        %1499 = vmatprep.subr.mxu0 0.0
        %1500 = vmatpush1.msra.mxu0 %v1494
        %1501 = vmatprep.subr.mxu0 0.0
        %1502 = vmatpush1.msra.mxu0 0.0
        %1503 = vmatprep.subr.mxu0 0.0
        %1504 = vmatpush1.msra.mxu0 0.0
        %1505 = vmatprep.subr.mxu0 0.0
        %1506 = vmatpush1.msra.mxu0 0.0
        %1507 = vmatprep.subr.mxu0 0.0
        %1508 = vmatpush1.msra.mxu0 0.0
        %1509 = vmatprep.subr.mxu0 0.0
        %1510 = vmatpush1.msra.mxu0 0.0
        %1511 = vmatprep.subr.mxu0 0.0
        %1512 = vmatpush1.msra.mxu0 0.0
        %1513 = vmatprep.subr.mxu0 0.0
        %1514 = vmatpush1.msra.mxu0 0.0
        %1515 = vmatprep.subr.mxu0 0.0
        %1516 = vmatpush1.msra.mxu0 0.0
        %1517 = vmatprep.subr.mxu0 0.0
        %1518 = vmatpush1.msra.mxu0 0.0
        %1519 = vmatprep.subr.mxu0 0.0
        %1520 = vmatpush1.msra.mxu0 0.0
        %1521 = vmatprep.subr.mxu0 0.0
        %1522 = vmatpush1.msra.mxu0 0.0
        %1523 = vmatprep.subr.mxu0 0.0
        %1524 = vmatpush1.msra.mxu0 0.0
        %1525 = vmatprep.subr.mxu0 0.0
        %1526 = vmatpush1.msra.mxu0 0.0
        %1527 = vmatprep.subr.mxu0 0.0
        %1528 = vmatpush1.msra.mxu0 0.0
        %1529 = vmatprep.subr.mxu0 0.0
        %1530 = vmatpush1.msra.mxu0 0.0
        %1531 = vmatprep.subr.mxu0 0.0
        %1532 = vmatpush1.msra.mxu0 0.0
        %1533 = vmatprep.subr.mxu0 0.0
        %1534 = vmatpush1.msra.mxu0 0.0
        %1535 = vmatprep.subr.mxu0 0.0
        %1536 = vmatpush1.msra.mxu0 0.0
        %1537 = vmatprep.subr.mxu0 0.0
        %1538 = vmatpush1.msra.mxu0 0.0
        %1539 = vmatprep.subr.mxu0 0.0
        %1540 = vmatpush1.msra.mxu0 0.0
        %1541 = vmatprep.subr.mxu0 0.0
        %1542 = vmatpush1.msra.mxu0 0.0
        %1543 = vmatprep.subr.mxu0 0.0
        %1544 = vmatpush1.msra.mxu0 0.0
        %1545 = vmatprep.subr.mxu0 0.0
        %1546 = vmatpush1.msra.mxu0 0.0
        %1547 = vmatprep.subr.mxu0 0.0
        %1548 = vmatpush1.msra.mxu0 0.0
        %1549 = vmatprep.subr.mxu0 0.0
        %1550 = vmatpush1.msra.mxu0 0.0
        %1551 = vmatprep.subr.mxu0 0.0
        %1552 = vmatpush1.msra.mxu0 0.0
        %1553 = vmatprep.subr.mxu0 0.0
        %1554 = vmatpush1.msra.mxu0 0.0
        %1555 = vmatprep.subr.mxu0 0.0
        %1556 = vmatpush1.msra.mxu0 0.0
        %1557 = vmatprep.subr.mxu0 0.0
        %1558 = vmatpush1.msra.mxu0 0.0
        %1559 = vmatprep.subr.mxu0 0.0
        %1560 = vmatpush1.msra.mxu0 0.0
        %1561 = vmatprep.subr.mxu0 0.0
        %1562 = vmatpush1.msra.mxu0 0.0
        %1563 = vmatprep.mubr.f32.mxu0 0.0
        %1564 = vmatmul.mubr.f32.gmra.mrb[0].mxu0 %v1497
        %v1565 = vpop.f32.mrb[0].mxu0
        %v1566 = vadd.f32 0.0, %v1565
        %v1567 = vpop.f32.mrb[0].mxu0
        %1568 = vdwg.mxu0
        %1569 = vrot.lane.b32.xlu0 %v576, 104
        %v1570 = vpop.permute.xlu0 %1569
        %1571 = vrot.lane.b32.xlu0 %v574, 72
        %v1572 = vpop.permute.xlu0 %1571
        %v1573 = vsel %vm581, %v1570, 0
        %v1575 = vsel %vm581, %v1572, 0
        %1577 = vmatprep.subr.mxu0 0.0
        %1578 = vmatpush1.xpose.msra.mxu0 %v1575
        %1579 = vmatprep.subr.mxu0 0.0
        %1580 = vmatpush1.xpose.msra.mxu0 0.0
        %1581 = vmatprep.subr.mxu0 0.0
        %1582 = vmatpush1.xpose.msra.mxu0 0.0
        %1583 = vmatprep.subr.mxu0 0.0
        %1584 = vmatpush1.xpose.msra.mxu0 0.0
        %1585 = vmatprep.subr.mxu0 0.0
        %1586 = vmatpush1.xpose.msra.mxu0 0.0
        %1587 = vmatprep.subr.mxu0 0.0
        %1588 = vmatpush1.xpose.msra.mxu0 0.0
        %1589 = vmatprep.subr.mxu0 0.0
        %1590 = vmatpush1.xpose.msra.mxu0 0.0
        %1591 = vmatprep.subr.mxu0 0.0
        %1592 = vmatpush1.xpose.msra.mxu0 0.0
        %1593 = vmatprep.subr.mxu0 0.0
        %1594 = vmatpush1.xpose.msra.mxu0 0.0
        %1595 = vmatprep.subr.mxu0 0.0
        %1596 = vmatpush1.xpose.msra.mxu0 0.0
        %1597 = vmatprep.subr.mxu0 0.0
        %1598 = vmatpush1.xpose.msra.mxu0 0.0
        %1599 = vmatprep.subr.mxu0 0.0
        %1600 = vmatpush1.xpose.msra.mxu0 0.0
        %1601 = vmatprep.subr.mxu0 0.0
        %1602 = vmatpush1.xpose.msra.mxu0 0.0
        %1603 = vmatprep.subr.mxu0 0.0
        %1604 = vmatpush1.xpose.msra.mxu0 0.0
        %1605 = vmatprep.subr.mxu0 0.0
        %1606 = vmatpush1.xpose.msra.mxu0 0.0
        %1607 = vmatprep.subr.mxu0 0.0
        %1608 = vmatpush1.xpose.msra.mxu0 0.0
        %1609 = vmatprep.subr.mxu0 0.0
        %1610 = vmatpush1.xpose.msra.mxu0 0.0
        %1611 = vmatprep.subr.mxu0 0.0
        %1612 = vmatpush1.xpose.msra.mxu0 0.0
        %1613 = vmatprep.subr.mxu0 0.0
        %1614 = vmatpush1.xpose.msra.mxu0 0.0
        %1615 = vmatprep.subr.mxu0 0.0
        %1616 = vmatpush1.xpose.msra.mxu0 0.0
        %1617 = vmatprep.subr.mxu0 0.0
        %1618 = vmatpush1.xpose.msra.mxu0 0.0
        %1619 = vmatprep.subr.mxu0 0.0
        %1620 = vmatpush1.xpose.msra.mxu0 0.0
        %1621 = vmatprep.subr.mxu0 0.0
        %1622 = vmatpush1.xpose.msra.mxu0 0.0
        %1623 = vmatprep.subr.mxu0 0.0
        %1624 = vmatpush1.xpose.msra.mxu0 0.0
        %1625 = vmatprep.subr.mxu0 0.0
        %1626 = vmatpush1.xpose.msra.mxu0 0.0
        %1627 = vmatprep.subr.mxu0 0.0
        %1628 = vmatpush1.xpose.msra.mxu0 0.0
        %1629 = vmatprep.subr.mxu0 0.0
        %1630 = vmatpush1.xpose.msra.mxu0 0.0
        %1631 = vmatprep.subr.mxu0 0.0
        %1632 = vmatpush1.xpose.msra.mxu0 0.0
        %1633 = vmatprep.subr.mxu0 0.0
        %1634 = vmatpush1.xpose.msra.mxu0 0.0
        %1635 = vmatprep.subr.mxu0 0.0
        %1636 = vmatpush1.xpose.msra.mxu0 0.0
        %1637 = vmatprep.subr.mxu0 0.0
        %1638 = vmatpush1.xpose.msra.mxu0 0.0
        %1639 = vmatprep.subr.mxu0 0.0
        %1640 = vmatpush1.xpose.msra.mxu0 0.0
        %1641 = vmatprep.mubr.f32.mxu0 0.0
        %1642 = vmatmul.mubr.f32.gmra.mrb[0].mxu0 %v1573
        %v1643 = vpop.f32.mrb[0].mxu0
        %v1644 = vadd.f32 0.0, %v1643
        %v1645 = vpop.f32.mrb[0].mxu0
        %1646 = vdwg.mxu0
        %1647 = vrot.lane.b32.xlu0 %v577, 104
        %v1648 = vpop.permute.xlu0 %1647
        %1649 = vrot.lane.b32.xlu0 %v575, 72
        %v1650 = vpop.permute.xlu0 %1649
        %v1651 = vsel %vm581, %v1648, 0
        %v1653 = vsel %vm581, %v1650, 0
        %1655 = vmatprep.subr.mxu0 0.0
        %1656 = vmatpush1.xpose.msra.mxu0 %v1653
        %1657 = vmatprep.subr.mxu0 0.0
        %1658 = vmatpush1.xpose.msra.mxu0 0.0
        %1659 = vmatprep.subr.mxu0 0.0
        %1660 = vmatpush1.xpose.msra.mxu0 0.0
        %1661 = vmatprep.subr.mxu0 0.0
        %1662 = vmatpush1.xpose.msra.mxu0 0.0
        %1663 = vmatprep.subr.mxu0 0.0
        %1664 = vmatpush1.xpose.msra.mxu0 0.0
        %1665 = vmatprep.subr.mxu0 0.0
        %1666 = vmatpush1.xpose.msra.mxu0 0.0
        %1667 = vmatprep.subr.mxu0 0.0
        %1668 = vmatpush1.xpose.msra.mxu0 0.0
        %1669 = vmatprep.subr.mxu0 0.0
        %1670 = vmatpush1.xpose.msra.mxu0 0.0
        %1671 = vmatprep.subr.mxu0 0.0
        %1672 = vmatpush1.xpose.msra.mxu0 0.0
        %1673 = vmatprep.subr.mxu0 0.0
        %1674 = vmatpush1.xpose.msra.mxu0 0.0
        %1675 = vmatprep.subr.mxu0 0.0
        %1676 = vmatpush1.xpose.msra.mxu0 0.0
        %1677 = vmatprep.subr.mxu0 0.0
        %1678 = vmatpush1.xpose.msra.mxu0 0.0
        %1679 = vmatprep.subr.mxu0 0.0
        %1680 = vmatpush1.xpose.msra.mxu0 0.0
        %1681 = vmatprep.subr.mxu0 0.0
        %1682 = vmatpush1.xpose.msra.mxu0 0.0
        %1683 = vmatprep.subr.mxu0 0.0
        %1684 = vmatpush1.xpose.msra.mxu0 0.0
        %1685 = vmatprep.subr.mxu0 0.0
        %1686 = vmatpush1.xpose.msra.mxu0 0.0
        %1687 = vmatprep.subr.mxu0 0.0
        %1688 = vmatpush1.xpose.msra.mxu0 0.0
        %1689 = vmatprep.subr.mxu0 0.0
        %1690 = vmatpush1.xpose.msra.mxu0 0.0
        %1691 = vmatprep.subr.mxu0 0.0
        %1692 = vmatpush1.xpose.msra.mxu0 0.0
        %1693 = vmatprep.subr.mxu0 0.0
        %1694 = vmatpush1.xpose.msra.mxu0 0.0
        %1695 = vmatprep.subr.mxu0 0.0
        %1696 = vmatpush1.xpose.msra.mxu0 0.0
        %1697 = vmatprep.subr.mxu0 0.0
        %1698 = vmatpush1.xpose.msra.mxu0 0.0
        %1699 = vmatprep.subr.mxu0 0.0
        %1700 = vmatpush1.xpose.msra.mxu0 0.0
        %1701 = vmatprep.subr.mxu0 0.0
        %1702 = vmatpush1.xpose.msra.mxu0 0.0
        %1703 = vmatprep.subr.mxu0 0.0
        %1704 = vmatpush1.xpose.msra.mxu0 0.0
        %1705 = vmatprep.subr.mxu0 0.0
        %1706 = vmatpush1.xpose.msra.mxu0 0.0
        %1707 = vmatprep.subr.mxu0 0.0
        %1708 = vmatpush1.xpose.msra.mxu0 0.0
        %1709 = vmatprep.subr.mxu0 0.0
        %1710 = vmatpush1.xpose.msra.mxu0 0.0
        %1711 = vmatprep.subr.mxu0 0.0
        %1712 = vmatpush1.xpose.msra.mxu0 0.0
        %1713 = vmatprep.subr.mxu0 0.0
        %1714 = vmatpush1.xpose.msra.mxu0 0.0
        %1715 = vmatprep.subr.mxu0 0.0
        %1716 = vmatpush1.xpose.msra.mxu0 0.0
        %1717 = vmatprep.subr.mxu0 0.0
        %1718 = vmatpush1.xpose.msra.mxu0 0.0
        %1719 = vmatprep.mubr.f32.mxu0 0.0
        %1720 = vmatmul.mubr.f32.gmra.mrb[0].mxu0 %v1651
        %v1721 = vpop.f32.mrb[0].mxu0
        %v1722 = vadd.f32 0.0, %v1721
        %v1723 = vpop.f32.mrb[0].mxu0
        %1724 = vdwg.mxu0
        %v1725 = vsel %vm581, %v1644, -inf
        %1726 = vmax.xlane.f32.xlu0 %v1725
        %v1727 = vpop.xlane.xlu0 %1726
        %v1728 = vsel %vm581, %v1722, -inf
        %1729 = vmax.xlane.f32.xlu0 %v1728
        %v1730 = vpop.xlane.xlu0 %1729
        %v1731 = vsub.f32 %v1644, %v1727
        %v1732 = vsub.f32 %v1722, %v1730
        %v1733 = vmul.f32 %v1731, 1.442695
        %v1734 = vpow.pop %v1733
        %v1735 = vmul.f32 %v1732, 1.442695
        %v1736 = vpow.pop %v1735
        %v1737 = vsel %vm581, %v1734, 0.0
        %1738 = vadd.xlane.f32.xlu0 %v1737
        %v1739 = vpop.xlane.xlu0 %1738
        %v1740 = vsel %vm581, %v1736, 0.0
        %1741 = vadd.xlane.f32.xlu0 %v1740
        %v1742 = vpop.xlane.xlu0 %1741
        %v1743 = vrcp.pop %v1739
        %v1744 = vmul.f32 %v1734, %v1743
        %v1745 = vrcp.pop %v1742
        %v1746 = vmul.f32 %v1736, %v1745
        %1747 = vrot.lane.b32.xlu0 %v574, 40
        %v1748 = vpop.permute.xlu0 %1747
        %v1751 = vsel %vm581, %v1744, 0
        %1753 = vmatprep.subr.mxu0 0.0
        %1754 = vmatpush1.msra.mxu0 %v1748
        %1755 = vmatprep.subr.mxu0 0.0
        %1756 = vmatpush1.msra.mxu0 0.0
        %1757 = vmatprep.subr.mxu0 0.0
        %1758 = vmatpush1.msra.mxu0 0.0
        %1759 = vmatprep.subr.mxu0 0.0
        %1760 = vmatpush1.msra.mxu0 0.0
        %1761 = vmatprep.subr.mxu0 0.0
        %1762 = vmatpush1.msra.mxu0 0.0
        %1763 = vmatprep.subr.mxu0 0.0
        %1764 = vmatpush1.msra.mxu0 0.0
        %1765 = vmatprep.subr.mxu0 0.0
        %1766 = vmatpush1.msra.mxu0 0.0
        %1767 = vmatprep.subr.mxu0 0.0
        %1768 = vmatpush1.msra.mxu0 0.0
        %1769 = vmatprep.subr.mxu0 0.0
        %1770 = vmatpush1.msra.mxu0 0.0
        %1771 = vmatprep.subr.mxu0 0.0
        %1772 = vmatpush1.msra.mxu0 0.0
        %1773 = vmatprep.subr.mxu0 0.0
        %1774 = vmatpush1.msra.mxu0 0.0
        %1775 = vmatprep.subr.mxu0 0.0
        %1776 = vmatpush1.msra.mxu0 0.0
        %1777 = vmatprep.subr.mxu0 0.0
        %1778 = vmatpush1.msra.mxu0 0.0
        %1779 = vmatprep.subr.mxu0 0.0
        %1780 = vmatpush1.msra.mxu0 0.0
        %1781 = vmatprep.subr.mxu0 0.0
        %1782 = vmatpush1.msra.mxu0 0.0
        %1783 = vmatprep.subr.mxu0 0.0
        %1784 = vmatpush1.msra.mxu0 0.0
        %1785 = vmatprep.subr.mxu0 0.0
        %1786 = vmatpush1.msra.mxu0 0.0
        %1787 = vmatprep.subr.mxu0 0.0
        %1788 = vmatpush1.msra.mxu0 0.0
        %1789 = vmatprep.subr.mxu0 0.0
        %1790 = vmatpush1.msra.mxu0 0.0
        %1791 = vmatprep.subr.mxu0 0.0
        %1792 = vmatpush1.msra.mxu0 0.0
        %1793 = vmatprep.subr.mxu0 0.0
        %1794 = vmatpush1.msra.mxu0 0.0
        %1795 = vmatprep.subr.mxu0 0.0
        %1796 = vmatpush1.msra.mxu0 0.0
        %1797 = vmatprep.subr.mxu0 0.0
        %1798 = vmatpush1.msra.mxu0 0.0
        %1799 = vmatprep.subr.mxu0 0.0
        %1800 = vmatpush1.msra.mxu0 0.0
        %1801 = vmatprep.subr.mxu0 0.0
        %1802 = vmatpush1.msra.mxu0 0.0
        %1803 = vmatprep.subr.mxu0 0.0
        %1804 = vmatpush1.msra.mxu0 0.0
        %1805 = vmatprep.subr.mxu0 0.0
        %1806 = vmatpush1.msra.mxu0 0.0
        %1807 = vmatprep.subr.mxu0 0.0
        %1808 = vmatpush1.msra.mxu0 0.0
        %1809 = vmatprep.subr.mxu0 0.0
        %1810 = vmatpush1.msra.mxu0 0.0
        %1811 = vmatprep.subr.mxu0 0.0
        %1812 = vmatpush1.msra.mxu0 0.0
        %1813 = vmatprep.subr.mxu0 0.0
        %1814 = vmatpush1.msra.mxu0 0.0
        %1815 = vmatprep.subr.mxu0 0.0
        %1816 = vmatpush1.msra.mxu0 0.0
        %1817 = vmatprep.mubr.f32.mxu0 0.0
        %1818 = vmatmul.mubr.f32.gmra.mrb[0].mxu0 %v1751
        %v1819 = vpop.f32.mrb[0].mxu0
        %v1820 = vadd.f32 0.0, %v1819
        %v1821 = vpop.f32.mrb[0].mxu0
        %1822 = vdwg.mxu0
        %1823 = vrot.lane.b32.xlu0 %v575, 40
        %v1824 = vpop.permute.xlu0 %1823
        %v1827 = vsel %vm581, %v1746, 0
        %1829 = vmatprep.subr.mxu0 0.0
        %1830 = vmatpush1.msra.mxu0 %v1824
        %1831 = vmatprep.subr.mxu0 0.0
        %1832 = vmatpush1.msra.mxu0 0.0
        %1833 = vmatprep.subr.mxu0 0.0
        %1834 = vmatpush1.msra.mxu0 0.0
        %1835 = vmatprep.subr.mxu0 0.0
        %1836 = vmatpush1.msra.mxu0 0.0
        %1837 = vmatprep.subr.mxu0 0.0
        %1838 = vmatpush1.msra.mxu0 0.0
        %1839 = vmatprep.subr.mxu0 0.0
        %1840 = vmatpush1.msra.mxu0 0.0
        %1841 = vmatprep.subr.mxu0 0.0
        %1842 = vmatpush1.msra.mxu0 0.0
        %1843 = vmatprep.subr.mxu0 0.0
        %1844 = vmatpush1.msra.mxu0 0.0
        %1845 = vmatprep.subr.mxu0 0.0
        %1846 = vmatpush1.msra.mxu0 0.0
        %1847 = vmatprep.subr.mxu0 0.0
        %1848 = vmatpush1.msra.mxu0 0.0
        %1849 = vmatprep.subr.mxu0 0.0
        %1850 = vmatpush1.msra.mxu0 0.0
        %1851 = vmatprep.subr.mxu0 0.0
        %1852 = vmatpush1.msra.mxu0 0.0
        %1853 = vmatprep.subr.mxu0 0.0
        %1854 = vmatpush1.msra.mxu0 0.0
        %1855 = vmatprep.subr.mxu0 0.0
        %1856 = vmatpush1.msra.mxu0 0.0
        %1857 = vmatprep.subr.mxu0 0.0
        %1858 = vmatpush1.msra.mxu0 0.0
        %1859 = vmatprep.subr.mxu0 0.0
        %1860 = vmatpush1.msra.mxu0 0.0
        %1861 = vmatprep.subr.mxu0 0.0
        %1862 = vmatpush1.msra.mxu0 0.0
        %1863 = vmatprep.subr.mxu0 0.0
        %1864 = vmatpush1.msra.mxu0 0.0
        %1865 = vmatprep.subr.mxu0 0.0
        %1866 = vmatpush1.msra.mxu0 0.0
        %1867 = vmatprep.subr.mxu0 0.0
        %1868 = vmatpush1.msra.mxu0 0.0
        %1869 = vmatprep.subr.mxu0 0.0
        %1870 = vmatpush1.msra.mxu0 0.0
        %1871 = vmatprep.subr.mxu0 0.0
        %1872 = vmatpush1.msra.mxu0 0.0
        %1873 = vmatprep.subr.mxu0 0.0
        %1874 = vmatpush1.msra.mxu0 0.0
        %1875 = vmatprep.subr.mxu0 0.0
        %1876 = vmatpush1.msra.mxu0 0.0
        %1877 = vmatprep.subr.mxu0 0.0
        %1878 = vmatpush1.msra.mxu0 0.0
        %1879 = vmatprep.subr.mxu0 0.0
        %1880 = vmatpush1.msra.mxu0 0.0
        %1881 = vmatprep.subr.mxu0 0.0
        %1882 = vmatpush1.msra.mxu0 0.0
        %1883 = vmatprep.subr.mxu0 0.0
        %1884 = vmatpush1.msra.mxu0 0.0
        %1885 = vmatprep.subr.mxu0 0.0
        %1886 = vmatpush1.msra.mxu0 0.0
        %1887 = vmatprep.subr.mxu0 0.0
        %1888 = vmatpush1.msra.mxu0 0.0
        %1889 = vmatprep.subr.mxu0 0.0
        %1890 = vmatpush1.msra.mxu0 0.0
        %1891 = vmatprep.subr.mxu0 0.0
        %1892 = vmatpush1.msra.mxu0 0.0
        %1893 = vmatprep.mubr.f32.mxu0 0.0
        %1894 = vmatmul.mubr.f32.gmra.mrb[0].mxu0 %v1827
        %v1895 = vpop.f32.mrb[0].mxu0
        %v1896 = vadd.f32 0.0, %v1895
        %v1897 = vpop.f32.mrb[0].mxu0
        %1898 = vdwg.mxu0
        %1901 = vrot.lane.b32.xlu0 %v1160, 8
        %v1902 = vpop.permute.xlu0 %1901
        %1903 = vrot.lane.b32.xlu0 %v1236, 8
        %v1904 = vpop.permute.xlu0 %1903
        %1909 = vrot.lane.b32.xlu0 %v1490, 16
        %v1910 = vpop.permute.xlu0 %1909
        %1911 = vrot.lane.b32.xlu0 %v1566, 16
        %v1912 = vpop.permute.xlu0 %1911
        %1917 = vrot.lane.b32.xlu0 %v1820, 24
        %v1918 = vpop.permute.xlu0 %1917
        %1919 = vrot.lane.b32.xlu0 %v1896, 24
        %v1920 = vpop.permute.xlu0 %1919
        %v1923 = vsel %vm581, %v830, %v1902
        %v1924 = vsel %vm581, %v906, %v1904
        %vm1925 = vcmask 130048
        %v1926 = vsel %vm1925, %v1923, %v1910
        %v1927 = vsel %vm1925, %v1924, %v1912
        %vm1928 = vcmask 195584
        %v1929 = vsel %vm1928, %v1926, %v1918
        %v1930 = vsel %vm1928, %v1927, %v1920
        %v1931 = vld [vmem:[%s4] sm:$0xff]
        %v1932 = vld [vmem:[%s4 + $0x8] sm:$0xff]
        %v1933 = vld [vmem:[%s4 + $0x10] sm:$0xff]
        %v1934 = vld [vmem:[%s4 + $0x18] sm:$0xff]
        %v1936 = vsel %vm445, %v1929, 0
        %v1939 = vsel %vm445, %v1930, 0
        %1941 = vmatprep.subr.mxu0 0.0
        %1942 = vmatpush1.msra.mxu0 %v1931
        %1943 = vmatprep.subr.mxu0 0.0
        %1944 = vmatpush1.msra.mxu0 %v1932
        %1945 = vmatprep.subr.mxu0 0.0
        %1946 = vmatpush1.msra.mxu0 %v1933
        %1947 = vmatprep.subr.mxu0 0.0
        %1948 = vmatpush1.msra.mxu0 %v1934
        %1949 = vmatprep.subr.mxu0 0.0
        %1950 = vmatpush1.msra.mxu0 0.0
        %1951 = vmatprep.subr.mxu0 0.0
        %1952 = vmatpush1.msra.mxu0 0.0
        %1953 = vmatprep.subr.mxu0 0.0
        %1954 = vmatpush1.msra.mxu0 0.0
        %1955 = vmatprep.subr.mxu0 0.0
        %1956 = vmatpush1.msra.mxu0 0.0
        %1957 = vmatprep.subr.mxu0 0.0
        %1958 = vmatpush1.msra.mxu0 0.0
        %1959 = vmatprep.subr.mxu0 0.0
        %1960 = vmatpush1.msra.mxu0 0.0
        %1961 = vmatprep.subr.mxu0 0.0
        %1962 = vmatpush1.msra.mxu0 0.0
        %1963 = vmatprep.subr.mxu0 0.0
        %1964 = vmatpush1.msra.mxu0 0.0
        %1965 = vmatprep.subr.mxu0 0.0
        %1966 = vmatpush1.msra.mxu0 0.0
        %1967 = vmatprep.subr.mxu0 0.0
        %1968 = vmatpush1.msra.mxu0 0.0
        %1969 = vmatprep.subr.mxu0 0.0
        %1970 = vmatpush1.msra.mxu0 0.0
        %1971 = vmatprep.subr.mxu0 0.0
        %1972 = vmatpush1.msra.mxu0 0.0
        %1973 = vmatprep.subr.mxu0 0.0
        %1974 = vmatpush1.msra.mxu0 0.0
        %1975 = vmatprep.subr.mxu0 0.0
        %1976 = vmatpush1.msra.mxu0 0.0
        %1977 = vmatprep.subr.mxu0 0.0
        %1978 = vmatpush1.msra.mxu0 0.0
        %1979 = vmatprep.subr.mxu0 0.0
        %1980 = vmatpush1.msra.mxu0 0.0
        %1981 = vmatprep.subr.mxu0 0.0
        %1982 = vmatpush1.msra.mxu0 0.0
        %1983 = vmatprep.subr.mxu0 0.0
        %1984 = vmatpush1.msra.mxu0 0.0
        %1985 = vmatprep.subr.mxu0 0.0
        %1986 = vmatpush1.msra.mxu0 0.0
        %1987 = vmatprep.subr.mxu0 0.0
        %1988 = vmatpush1.msra.mxu0 0.0
        %1989 = vmatprep.subr.mxu0 0.0
        %1990 = vmatpush1.msra.mxu0 0.0
        %1991 = vmatprep.subr.mxu0 0.0
        %1992 = vmatpush1.msra.mxu0 0.0
        %1993 = vmatprep.subr.mxu0 0.0
        %1994 = vmatpush1.msra.mxu0 0.0
        %1995 = vmatprep.subr.mxu0 0.0
        %1996 = vmatpush1.msra.mxu0 0.0
        %1997 = vmatprep.subr.mxu0 0.0
        %1998 = vmatpush1.msra.mxu0 0.0
        %1999 = vmatprep.subr.mxu0 0.0
        %2000 = vmatpush1.msra.mxu0 0.0
        %2001 = vmatprep.subr.mxu0 0.0
        %2002 = vmatpush1.msra.mxu0 0.0
        %2003 = vmatprep.subr.mxu0 0.0
        %2004 = vmatpush1.msra.mxu0 0.0
        %2005 = vmatprep.mubr.f32.mxu0 0.0
        %2006 = vmatmul.mubr.f32.gmra.mrb[0].mxu0 %v1936
        %v2007 = vpop.f32.mrb[0].mxu0
        %v2008 = vadd.f32 0.0, %v2007
        %v2009 = vpop.f32.mrb[0].mxu0
        %2010 = vmatprep.mubr.f32.mxu0 0.0
        %2011 = vmatmul.mubr.f32.gmra.mrb[0].mxu0 %v1939
        %v2012 = vpop.f32.mrb[0].mxu0
        %v2013 = vadd.f32 0.0, %v2012
        %v2014 = vpop.f32.mrb[0].mxu0
        %2015 = vdwg.mxu0
        %v2016 = vmax.f32 %v2008, 0.0
        %v2017 = vmax.f32 %v2013, 0.0
        %v2018 = vadd.f32 %v441, %v2016
        %v2019 = vadd.f32 %v442, %v2017
        %v2020 = vld [vmem:[#allocation2] sm:$0x1]
        %v2021 = vld [vmem:[#allocation5] sm:$0x1]
        %v2022 = vsel %vm445, %v2018, 0.0
        %2023 = vadd.xlane.f32.xlu0 %v2022
        %v2024 = vpop.xlane.xlu0 %2023
        %v2025 = vsel %vm445, %v2019, 0.0
        %2026 = vadd.xlane.f32.xlu0 %v2025
        %v2027 = vpop.xlane.xlu0 %2026
        %v2028 = vmul.f32 %v2024, %v452
        %v2029 = vmul.f32 %v2027, %v452
        %v2030 = vsub.f32 %v2018, %v2028
        %v2031 = vsub.f32 %v2019, %v2029
        %v2032 = vmul.f32 %v2030, %v2030
        %v2033 = vmul.f32 %v2031, %v2031
        %v2034 = vsel %vm445, %v2032, 0.0
        %2035 = vadd.xlane.f32.xlu0 %v2034
        %v2036 = vpop.xlane.xlu0 %2035
        %v2037 = vsel %vm445, %v2033, 0.0
        %2038 = vadd.xlane.f32.xlu0 %v2037
        %v2039 = vpop.xlane.xlu0 %2038
        %v2040 = vmul.f32 %v2036, %v452
        %v2041 = vmul.f32 %v2039, %v452
        %v2042 = vadd.f32 %v2040, 1e-05
        %v2043 = vadd.f32 %v2041, 1e-05
        %v2044 = vrsqrt.pop %v2042
        %v2045 = vrsqrt.pop %v2043
        %v2046 = vmul.f32 %v2030, %v2044
        %v2047 = vmul.f32 %v2031, %v2045
        %v2049 = vlaneseq
        %v2050 = vshrl.u32 %v2049, 7
        %v2051 = vsub.s32 0, %v2050
        %v2052 = vrot.slane %v2020, %v2051
        %v2054 = vmul.f32 %v2046, %v2052
        %v2055 = vmul.f32 %v2047, %v2052
        %v2057 = vlaneseq
        %v2058 = vshrl.u32 %v2057, 7
        %v2059 = vsub.s32 0, %v2058
        %v2060 = vrot.slane %v2021, %v2059
        %v2062 = vadd.f32 %v2054, %v2060
        %v2063 = vadd.f32 %v2055, %v2060
        %v2064 = vld [vmem:[#allocation7] sm:$0xff]
        %v2065 = vld [vmem:[#allocation7 + $0x8] sm:$0xff]
        %v2066 = vld [vmem:[#allocation7 + $0x10] sm:$0xff]
        %v2067 = vld [vmem:[#allocation7 + $0x18] sm:$0xff]
        %v2068 = vld [vmem:[#allocation8] sm:$0x1]
        %v2070 = vlaneseq
        %v2071 = vshrl.u32 %v2070, 7
        %v2072 = vsub.s32 0, %v2071
        %v2073 = vrot.slane %v2068, %v2072
        %v2076 = vsel %vm445, %v2062, 0
        %v2079 = vsel %vm445, %v2063, 0
        %2081 = vmatprep.subr.mxu0 0.0
        %2082 = vmatpush1.msra.mxu0 %v2064
        %2083 = vmatprep.subr.mxu0 0.0
        %2084 = vmatpush1.msra.mxu0 %v2065
        %2085 = vmatprep.subr.mxu0 0.0
        %2086 = vmatpush1.msra.mxu0 %v2066
        %2087 = vmatprep.subr.mxu0 0.0
        %2088 = vmatpush1.msra.mxu0 %v2067
        %2089 = vmatprep.subr.mxu0 0.0
        %2090 = vmatpush1.msra.mxu0 0.0
        %2091 = vmatprep.subr.mxu0 0.0
        %2092 = vmatpush1.msra.mxu0 0.0
        %2093 = vmatprep.subr.mxu0 0.0
        %2094 = vmatpush1.msra.mxu0 0.0
        %2095 = vmatprep.subr.mxu0 0.0
        %2096 = vmatpush1.msra.mxu0 0.0
        %2097 = vmatprep.subr.mxu0 0.0
        %2098 = vmatpush1.msra.mxu0 0.0
        %2099 = vmatprep.subr.mxu0 0.0
        %2100 = vmatpush1.msra.mxu0 0.0
        %2101 = vmatprep.subr.mxu0 0.0
        %2102 = vmatpush1.msra.mxu0 0.0
        %2103 = vmatprep.subr.mxu0 0.0
        %2104 = vmatpush1.msra.mxu0 0.0
        %2105 = vmatprep.subr.mxu0 0.0
        %2106 = vmatpush1.msra.mxu0 0.0
        %2107 = vmatprep.subr.mxu0 0.0
        %2108 = vmatpush1.msra.mxu0 0.0
        %2109 = vmatprep.subr.mxu0 0.0
        %2110 = vmatpush1.msra.mxu0 0.0
        %2111 = vmatprep.subr.mxu0 0.0
        %2112 = vmatpush1.msra.mxu0 0.0
        %2113 = vmatprep.subr.mxu0 0.0
        %2114 = vmatpush1.msra.mxu0 0.0
        %2115 = vmatprep.subr.mxu0 0.0
        %2116 = vmatpush1.msra.mxu0 0.0
        %2117 = vmatprep.subr.mxu0 0.0
        %2118 = vmatpush1.msra.mxu0 0.0
        %2119 = vmatprep.subr.mxu0 0.0
        %2120 = vmatpush1.msra.mxu0 0.0
        %2121 = vmatprep.subr.mxu0 0.0
        %2122 = vmatpush1.msra.mxu0 0.0
        %2123 = vmatprep.subr.mxu0 0.0
        %2124 = vmatpush1.msra.mxu0 0.0
        %2125 = vmatprep.subr.mxu0 0.0
        %2126 = vmatpush1.msra.mxu0 0.0
        %2127 = vmatprep.subr.mxu0 0.0
        %2128 = vmatpush1.msra.mxu0 0.0
        %2129 = vmatprep.subr.mxu0 0.0
        %2130 = vmatpush1.msra.mxu0 0.0
        %2131 = vmatprep.subr.mxu0 0.0
        %2132 = vmatpush1.msra.mxu0 0.0
        %2133 = vmatprep.subr.mxu0 0.0
        %2134 = vmatpush1.msra.mxu0 0.0
        %2135 = vmatprep.subr.mxu0 0.0
        %2136 = vmatpush1.msra.mxu0 0.0
        %2137 = vmatprep.subr.mxu0 0.0
        %2138 = vmatpush1.msra.mxu0 0.0
        %2139 = vmatprep.subr.mxu0 0.0
        %2140 = vmatpush1.msra.mxu0 0.0
        %2141 = vmatprep.subr.mxu0 0.0
        %2142 = vmatpush1.msra.mxu0 0.0
        %2143 = vmatprep.subr.mxu0 0.0
        %2144 = vmatpush1.msra.mxu0 0.0
        %2145 = vmatprep.mubr.f32.mxu0 0.0
        %2146 = vmatmul.mubr.f32.gmra.mrb[0].mxu0 %v2076
        %v2147 = vpop.f32.mrb[0].mxu0
        %v2148 = vadd.f32 %v2073, %v2147
        %v2149 = vpop.f32.mrb[0].mxu0
        %2150 = vmatprep.mubr.f32.mxu0 0.0
        %2151 = vmatmul.mubr.f32.gmra.mrb[0].mxu0 %v2079
        %v2152 = vpop.f32.mrb[0].mxu0
        %v2153 = vadd.f32 %v2073, %v2152
        %v2154 = vpop.f32.mrb[0].mxu0
        %2155 = vdwg.mxu0
        %v2156 = vmax.f32 %v2148, 0.0
        %v2157 = vmax.f32 %v2153, 0.0
        %v2158 = vld [vmem:[%s9] sm:$0xff]
        %v2159 = vld [vmem:[%s9 + $0x8] sm:$0xff]
        %v2160 = vld [vmem:[%s9 + $0x10] sm:$0xff]
        %v2161 = vld [vmem:[%s9 + $0x18] sm:$0xff]
        %v2162 = vld [vmem:[%s9 + $0x20] sm:$0xff]
        %v2163 = vld [vmem:[%s9 + $0x28] sm:$0xff]
        %v2164 = vld [vmem:[%s9 + $0x30] sm:$0xff]
        %v2165 = vld [vmem:[%s9 + $0x38] sm:$0xff]
        %v2166 = vld [vmem:[%s10] sm:$0x1]
        %v2168 = vlaneseq
        %v2169 = vshrl.u32 %v2168, 7
        %v2170 = vsub.s32 0, %v2169
        %v2171 = vrot.slane %v2166, %v2170
        %vm2173 = vcmask 523264
        %v2175 = vsel %vm2173, %v2156, 0
        %v2178 = vsel %vm2173, %v2157, 0
        %2180 = vmatprep.subr.mxu0 0.0
        %2181 = vmatpush1.msra.mxu0 %v2158
        %2182 = vmatprep.subr.mxu0 0.0
        %2183 = vmatpush1.msra.mxu0 %v2159
        %2184 = vmatprep.subr.mxu0 0.0
        %2185 = vmatpush1.msra.mxu0 %v2160
        %2186 = vmatprep.subr.mxu0 0.0
        %2187 = vmatpush1.msra.mxu0 %v2161
        %2188 = vmatprep.subr.mxu0 0.0
        %2189 = vmatpush1.msra.mxu0 %v2162
        %2190 = vmatprep.subr.mxu0 0.0
        %2191 = vmatpush1.msra.mxu0 %v2163
        %2192 = vmatprep.subr.mxu0 0.0
        %2193 = vmatpush1.msra.mxu0 %v2164
        %2194 = vmatprep.subr.mxu0 0.0
        %2195 = vmatpush1.msra.mxu0 %v2165
        %2196 = vmatprep.subr.mxu0 0.0
        %2197 = vmatpush1.msra.mxu0 0.0
        %2198 = vmatprep.subr.mxu0 0.0
        %2199 = vmatpush1.msra.mxu0 0.0
        %2200 = vmatprep.subr.mxu0 0.0
        %2201 = vmatpush1.msra.mxu0 0.0
        %2202 = vmatprep.subr.mxu0 0.0
        %2203 = vmatpush1.msra.mxu0 0.0
        %2204 = vmatprep.subr.mxu0 0.0
        %2205 = vmatpush1.msra.mxu0 0.0
        %2206 = vmatprep.subr.mxu0 0.0
        %2207 = vmatpush1.msra.mxu0 0.0
        %2208 = vmatprep.subr.mxu0 0.0
        %2209 = vmatpush1.msra.mxu0 0.0
        %2210 = vmatprep.subr.mxu0 0.0
        %2211 = vmatpush1.msra.mxu0 0.0
        %2212 = vmatprep.subr.mxu0 0.0
        %2213 = vmatpush1.msra.mxu0 0.0
        %2214 = vmatprep.subr.mxu0 0.0
        %2215 = vmatpush1.msra.mxu0 0.0
        %2216 = vmatprep.subr.mxu0 0.0
        %2217 = vmatpush1.msra.mxu0 0.0
        %2218 = vmatprep.subr.mxu0 0.0
        %2219 = vmatpush1.msra.mxu0 0.0
        %2220 = vmatprep.subr.mxu0 0.0
        %2221 = vmatpush1.msra.mxu0 0.0
        %2222 = vmatprep.subr.mxu0 0.0
        %2223 = vmatpush1.msra.mxu0 0.0
        %2224 = vmatprep.subr.mxu0 0.0
        %2225 = vmatpush1.msra.mxu0 0.0
        %2226 = vmatprep.subr.mxu0 0.0
        %2227 = vmatpush1.msra.mxu0 0.0
        %2228 = vmatprep.subr.mxu0 0.0
        %2229 = vmatpush1.msra.mxu0 0.0
        %2230 = vmatprep.subr.mxu0 0.0
        %2231 = vmatpush1.msra.mxu0 0.0
        %2232 = vmatprep.subr.mxu0 0.0
        %2233 = vmatpush1.msra.mxu0 0.0
        %2234 = vmatprep.subr.mxu0 0.0
        %2235 = vmatpush1.msra.mxu0 0.0
        %2236 = vmatprep.subr.mxu0 0.0
        %2237 = vmatpush1.msra.mxu0 0.0
        %2238 = vmatprep.subr.mxu0 0.0
        %2239 = vmatpush1.msra.mxu0 0.0
        %2240 = vmatprep.subr.mxu0 0.0
        %2241 = vmatpush1.msra.mxu0 0.0
        %2242 = vmatprep.subr.mxu0 0.0
        %2243 = vmatpush1.msra.mxu0 0.0
        %2244 = vmatprep.mubr.f32.mxu0 0.0
        %2245 = vmatmul.mubr.f32.gmra.mrb[0].mxu0 %v2175
        %v2246 = vpop.f32.mrb[0].mxu0
        %v2247 = vadd.f32 %v2171, %v2246
        %v2248 = vpop.f32.mrb[0].mxu0
        %2249 = vmatprep.mubr.f32.mxu0 0.0
        %2250 = vmatmul.mubr.f32.gmra.mrb[0].mxu0 %v2178
        %v2251 = vpop.f32.mrb[0].mxu0
        %v2252 = vadd.f32 %v2171, %v2251
        %v2253 = vpop.f32.mrb[0].mxu0
        %2254 = vdwg.mxu0
        %v2255 = vadd.f32 %v2062, %v2247
        %v2256 = vadd.f32 %v2063, %v2252
        %2257 = vst.msk [vmem:[%s433] sm:$0xff] %vm445, %v2255
        %2258 = vst.msk [vmem:[%s433 + $0x8] sm:$0xff] %vm445, %v2256
        %s2259 = sand.u32 %s272, 1
        %s2260 = scalar_lea.sflag [#allocation4], %s2259
        %s2261 = sand.u32 %s272, 1
        %s2262 = smul.addr %s2261, 16
        %s2263 = scalar_lea.vmem [#allocation10], %s2262
        // Predicated region
        $region81: #{tpu_custom_call.1} parent=63 // pred_check
          %p2264 = pneg %p282
        $region82: #{tpu_custom_call.1} parent=63 // pred_check_branch
          %2266 = sbr.rel (%p2264) target = $region84
        $region83: #{tpu_custom_call.1} parent=63 // pred_region
          %s2267 = smul.u32 2, %s28
          %s2269 = ssub.s32 256, 256
          %2270 = vsyncadd %s2260, %s2269
          %s2271 = smul.addr %s2267, 128
          %s2272 = scalar_lea.hbm %s11, %s2271
          %s2273 = sshll.u32 %s2263, 4
          %s2274 = int_to_ptr.vmem [resolvable:$true] %s2273
          %2279 = dma.vmem_to_hbm [thread:$0]  %s2274, 256, %s2272, %s2260, 128, 128, 8
        $region84: #{tpu_custom_call.1} parent=63 // pred_fallthru
          _
      $region64: #{tpu_custom_call.1} parent=5 // pred_fallthru
        _
      %p2280 = scmp.le.s32.totalorder 2, %s23
      // Predicated region
      $region85: #{tpu_custom_call.1} parent=5 // pred_check
        %p2281 = pneg %p2280
      $region86: #{tpu_custom_call.1} parent=5 // pred_check_branch
        %2283 = sbr.rel (%p2281) target = $region88
      $region87: #{tpu_custom_call.1} parent=5 // pred_region
        %s2284 = ssub.s32 %s23, 2
        // Predicated region
        $region89: #{tpu_custom_call.1} parent=87 // pred_check
          %p2285 = pneg %p288
        $region90: #{tpu_custom_call.1} parent=87 // pred_check_branch
          %2287 = sbr.rel (%p2285) target = $region92
        $region91: #{tpu_custom_call.1} parent=87 // pred_region
          %s2288 = sand.u32 %s273, 1
          %s2289 = scalar_lea.sflag [#allocation4], %s2288
          %s2290 = sand.u32 %s273, 1
          %s2291 = smul.addr %s2290, 16
          %s2292 = scalar_lea.vmem [#allocation10], %s2291
          %2293 = dma.done %s2289, 256
        $region92: #{tpu_custom_call.1} parent=87 // pred_fallthru
          _
      $region88: #{tpu_custom_call.1} parent=5 // pred_fallthru
        _
    $region6: #{tpu_custom_call.1} parent=1 // loop_footer
      %s27 = sadd.s32 1, %s23
    $region7: #{tpu_custom_call.1} parent=1 // loop_footer_branch
      %22 = sbr.rel target = $region3
    $region8: #{tpu_custom_call.1} parent=1 // loop_exit
      _
    %2294 = vsyncpa [#allocation3], 1
    %s2295 = scalar_lea.sflag [#allocation3], 1
    %2296 = vsyncpa %s2295, 1
    %2297 = vsyncpa [#allocation6], 1
    %2298 = vsyncpa [#allocation9], 1
    %2299 = vsyncpa [#allocation4], 1
    %s2300 = scalar_lea.sflag [#allocation4], 1
    %2301 = vsyncpa %s2300, 1

</llo_original>
